<compile_context>
chip_gen: v5e
topology: v5e:2x2
jax: 0.10.0
libtpu: 0.0.40
codegen_flags: <defaults>
</compile_context>

<pallas_src>
import jax
import jax.numpy as jnp
import numpy as np
from jax.experimental import pallas as pl
from jax.experimental.pallas import tpu as pltpu

B = 8         # batch_size (hardcoded by the torch expand([8, 100, 100]))
S = 100       # structural_dimension_size
D_OUT = 100   # output dim of both F_u and F_e
HIDDEN = 32   # hidden_dimension -> input features = 2 * HIDDEN
F_IN = 2 * HIDDEN
D_PAD = 128   # lane-aligned padded feature dim
R = B * S     # flattened rows = 800


def _esa_kernel(x_ref, s_ref, wu_ref, bu_ref, we_ref, be_ref, o_ref):
    # x_ref : (R, F_IN)        flattened (batch*seq, features)
    # s_ref : (R, 1)           structure scalar per row
    # wu_ref: (F_IN, D_PAD)    zero-padded  (cols 100..127 are zero)
    # bu_ref: (1, D_PAD)       zero-padded
    # we_ref: (D_PAD, D_PAD)   zero-padded  (rows/cols 100..127 are zero)
    # be_ref: (1, D_PAD)       zero-padded
    # o_ref : (R, D_PAD)
    x = x_ref[...]                                           # (R, F_IN)
    u = jnp.tanh(
        jnp.dot(x, wu_ref[...], preferred_element_type=jnp.float32)
        + bu_ref[...]
    )                                                        # (R, D_PAD); padded lanes = tanh(0) = 0
    t = u * s_ref[...]                                       # (R, D_PAD) * (R, 1) broadcast
    e = jnp.tanh(
        jnp.dot(t, we_ref[...], preferred_element_type=jnp.float32)
        + be_ref[...]
    )                                                        # (R, D_PAD); padded lanes = 0 pre-slice
    o_ref[...] = e.astype(o_ref.dtype)


def explict_structured_attention(x, structure, w_u, b_u, w_e, b_e):
    """x: (B, S, 2H) f32, structure: (B, S) f32 -> (B, S, 100) f32.

    Weights are stored as (in_features, out_features) so the kernel does x @ W.
    """
    x2 = x.astype(jnp.float32).reshape(R, F_IN)              # contiguous, free
    s2 = structure.astype(jnp.float32).reshape(R, 1)

    # Zero-pad parameters to the 128-lane boundary (padding is semantically inert).
    wu_p = jnp.zeros((F_IN, D_PAD), jnp.float32).at[:, :D_OUT].set(w_u)
    bu_p = jnp.zeros((1, D_PAD), jnp.float32).at[:, :D_OUT].set(b_u.reshape(1, D_OUT))
    we_p = jnp.zeros((D_PAD, D_PAD), jnp.float32).at[:D_OUT, :D_OUT].set(w_e)
    be_p = jnp.zeros((1, D_PAD), jnp.float32).at[:, :D_OUT].set(b_e.reshape(1, D_OUT))

    # Single kernel invocation: whole problem (~700 KB) is VMEM-resident.
    out_pad = pl.pallas_call(
        _esa_kernel,
        out_shape=jax.ShapeDtypeStruct((R, D_PAD), jnp.float32),
        compiler_params=pltpu.CompilerParams(
            vmem_limit_bytes=16 * 1024 * 1024,
        ),
    )(x2, s2, wu_p, bu_p, we_p, be_p)

    return out_pad[:, :D_OUT].reshape(B, S, D_OUT)


def _xavier_uniform(key, fan_in, fan_out):
    # torch.nn.init.xavier_uniform_ bound, stored as (in, out) for x @ W.
    bound = float(np.sqrt(6.0 / (fan_in + fan_out)))
    return jax.random.uniform(
        key, (fan_in, fan_out), jnp.float32, minval=-bound, maxval=bound
    )


def _reference(x, structure, w_u, b_u, w_e, b_e):
    u = jnp.tanh(jnp.einsum("bsf,fo->bso", x, w_u) + b_u)
    t = u * structure[:, :, None]
    e = jnp.tanh(jnp.einsum("bsf,fo->bso", t, w_e) + b_e)
    return e


if __name__ == "__main__":
    key = jax.random.PRNGKey(0)
    k_x, k_s, k_wu, k_we = jax.random.split(key, 4)

    x = jax.random.normal(k_x, (B, S, F_IN), jnp.float32)
    structure = jax.random.normal(k_s, (B, S), jnp.float32)

    # Deterministic parameter init mirroring the module's __init__:
    # xavier_uniform weights, zero biases.
    w_u = _xavier_uniform(k_wu, F_IN, D_OUT)
    b_u = jnp.zeros((D_OUT,), jnp.float32)
    w_e = _xavier_uniform(k_we, D_OUT, D_OUT)
    b_e = jnp.zeros((D_OUT,), jnp.float32)

    out = explict_structured_attention(x, structure, w_u, b_u, w_e, b_e)
    out = jax.block_until_ready(out)

    ref = _reference(x, structure, w_u, b_u, w_e, b_e)
    np.testing.assert_allclose(np.asarray(out), np.asarray(ref),
                               rtol=1e-5, atol=1e-5)
    print("KERNEL_OK")
</pallas_src>

<mosaic_0001>
module attributes {stable_mosaic.version = 11 : i64} {
  func.func @_esa_kernel(%arg0: memref<800x64xf32, #tpu.memory_space<vmem>>, %arg1: memref<800x1xf32, #tpu.memory_space<vmem>>, %arg2: memref<64x128xf32, #tpu.memory_space<vmem>>, %arg3: memref<1x128xf32, #tpu.memory_space<vmem>>, %arg4: memref<128x128xf32, #tpu.memory_space<vmem>>, %arg5: memref<1x128xf32, #tpu.memory_space<vmem>>, %arg6: memref<800x128xf32, #tpu.memory_space<vmem>>) attributes {dimension_semantics = [], scalar_prefetch = 0 : i64, scratch_operands = 0 : i64, tpu.core_type = #tpu.core_type<tc>} {
    %c0 = arith.constant 0 : index
    %c0_0 = arith.constant 0 : index
    %0 = vector.load %arg0[%c0, %c0_0] : memref<800x64xf32, #tpu.memory_space<vmem>>, vector<800x64xf32>
    %c0_1 = arith.constant 0 : index
    %c0_2 = arith.constant 0 : index
    %1 = vector.load %arg2[%c0_1, %c0_2] : memref<64x128xf32, #tpu.memory_space<vmem>>, vector<64x128xf32>
    %cst = arith.constant dense<0.000000e+00> : vector<800x128xf32>
    %2 = tpu.matmul %0, %1, %cst {dimension_numbers = #tpu.dot_dimension_numbers<[1], [0], [0], [1], [0, 0, 1, 1], [], []>} : vector<800x64xf32>, vector<64x128xf32>, vector<800x128xf32> -> vector<800x128xf32>
    %c0_3 = arith.constant 0 : index
    %c0_4 = arith.constant 0 : index
    %3 = vector.load %arg3[%c0_3, %c0_4] : memref<1x128xf32, #tpu.memory_space<vmem>>, vector<1x128xf32>
    %4 = vector.broadcast %3 : vector<1x128xf32> to vector<800x128xf32>
    %5 = arith.addf %2, %4 : vector<800x128xf32>
    %6 = math.tanh %5 : vector<800x128xf32>
    %c0_5 = arith.constant 0 : index
    %c0_6 = arith.constant 0 : index
    %7 = vector.load %arg1[%c0_5, %c0_6] : memref<800x1xf32, #tpu.memory_space<vmem>>, vector<800x1xf32>
    %8 = vector.broadcast %7 : vector<800x1xf32> to vector<800x128xf32>
    %9 = arith.mulf %6, %8 : vector<800x128xf32>
    %c0_7 = arith.constant 0 : index
    %c0_8 = arith.constant 0 : index
    %10 = vector.load %arg4[%c0_7, %c0_8] : memref<128x128xf32, #tpu.memory_space<vmem>>, vector<128x128xf32>
    %cst_9 = arith.constant dense<0.000000e+00> : vector<800x128xf32>
    %11 = tpu.matmul %9, %10, %cst_9 {dimension_numbers = #tpu.dot_dimension_numbers<[1], [0], [0], [1], [0, 0, 1, 1], [], []>} : vector<800x128xf32>, vector<128x128xf32>, vector<800x128xf32> -> vector<800x128xf32>
    %c0_10 = arith.constant 0 : index
    %c0_11 = arith.constant 0 : index
    %12 = vector.load %arg5[%c0_10, %c0_11] : memref<1x128xf32, #tpu.memory_space<vmem>>, vector<1x128xf32>
    %13 = vector.broadcast %12 : vector<1x128xf32> to vector<800x128xf32>
    %14 = arith.addf %11, %13 : vector<800x128xf32>
    %15 = math.tanh %14 : vector<800x128xf32>
    %c0_12 = arith.constant 0 : index
    %c0_13 = arith.constant 0 : index
    %16 = vector.load %arg6[%c0_12, %c0_13] : memref<800x128xf32, #tpu.memory_space<vmem>>, vector<800x128xf32>
    tpu.vector_store %arg6[%c0_12, %c0_13], %15 {strides = array<i32>} : memref<800x128xf32, #tpu.memory_space<vmem>>, vector<800x128xf32>,
    return
  }
}

</mosaic_0001>

<llo_original>
// kernel: tpu_custom_call.1
$region0: #{tpu_custom_call.1}
  #allocation0 [shape = 'u32[]', space=smem, size = 0x4, offset = 0x4, fixed_abs, tag = 'smem constant byte address 0x4 - core index']
  #allocation1 [shape = 'u32[72,128]{1,0:T(1,128)}', space=vmem, size = 0x9000, scoped, tag = 'internal scratch']
  %s0 = inlined_call_operand.vmem [shape: f32[800,64], index: 0, kind: input, shape index: {}]
  %s1 = inlined_call_operand.vmem [shape: f32[800,1], index: 1, kind: input, shape index: {}]
  %s2 = inlined_call_operand.vmem [shape: f32[64,128], index: 2, kind: input, shape index: {}]
  %s3 = inlined_call_operand.vmem [shape: f32[1,128], index: 3, kind: input, shape index: {}]
  %s4 = inlined_call_operand.vmem [shape: f32[128,128], index: 4, kind: input, shape index: {}]
  %s5 = inlined_call_operand.vmem [shape: f32[1,128], index: 5, kind: input, shape index: {}]
  %s6 = inlined_call_operand.hbm [shape: f32[800,128], index: 6, kind: output, shape index: {}]
  %s7 = sld [smem:[#allocation0]]
  $region34: #{tpu_custom_call.1} parent=0
    _
  %s9 = ssub.s32 1, %s7
  %s10 = scalar_select 0, %s9, %s7
  $region1: #{tpu_custom_call.1} parent=0
    #allocation2 [shape = 'u8[409600]{0}', space=vmem, size = 0x64000, scoped, tag = 'output window, operand 0, single buffered']
    #allocation3 [shape = 's32[1]{0}', space=sflag, size = 0x4, scoped, tag = 'scoped memory for tpu_custom_call.1']
    %11 = vsyncpa [#allocation3], 0
    // Predicated region
    $region2: #{tpu_custom_call.1} parent=1 // pred_check
      _
    $region3: #{tpu_custom_call.1} parent=1 // pred_check_branch
      %13 = sbr.rel (0) target = $region5
    $region4: #{tpu_custom_call.1} parent=1 // pred_region
      _
    $region5: #{tpu_custom_call.1} parent=1 // pred_fallthru
      _
    // Predicated region
    $region6: #{tpu_custom_call.1} parent=1 // pred_check
      _
    $region7: #{tpu_custom_call.1} parent=1 // pred_check_branch
      %15 = sbr.rel (0) target = $region9
    $region8: #{tpu_custom_call.1} parent=1 // pred_region
      _
    $region9: #{tpu_custom_call.1} parent=1 // pred_fallthru
      _
    // Predicated region
    $region10: #{tpu_custom_call.1} parent=1 // pred_check
      _
    $region11: #{tpu_custom_call.1} parent=1 // pred_check_branch
      %17 = sbr.rel (0) target = $region13
    $region12: #{tpu_custom_call.1} parent=1 // pred_region
      _
    $region13: #{tpu_custom_call.1} parent=1 // pred_fallthru
      _
    // Predicated region
    $region14: #{tpu_custom_call.1} parent=1 // pred_check
      _
    $region15: #{tpu_custom_call.1} parent=1 // pred_check_branch
      %19 = sbr.rel (0) target = $region17
    $region16: #{tpu_custom_call.1} parent=1 // pred_region
      _
    $region17: #{tpu_custom_call.1} parent=1 // pred_fallthru
      _
    // Predicated region
    $region18: #{tpu_custom_call.1} parent=1 // pred_check
      _
    $region19: #{tpu_custom_call.1} parent=1 // pred_check_branch
      %21 = sbr.rel (0) target = $region21
    $region20: #{tpu_custom_call.1} parent=1 // pred_region
      _
    $region21: #{tpu_custom_call.1} parent=1 // pred_fallthru
      _
    // Predicated region
    $region22: #{tpu_custom_call.1} parent=1 // pred_check
      _
    $region23: #{tpu_custom_call.1} parent=1 // pred_check_branch
      %23 = sbr.rel (0) target = $region25
    $region24: #{tpu_custom_call.1} parent=1 // pred_region
      _
    $region25: #{tpu_custom_call.1} parent=1 // pred_fallthru
      _
    %v24 = vld [vmem:[%s0] sm:$0xff]
    %v25 = vld [vmem:[%s0 + $0x8] sm:$0xff]
    %v26 = vld [vmem:[%s0 + $0x10] sm:$0xff]
    %v27 = vld [vmem:[%s0 + $0x18] sm:$0xff]
    %v28 = vld [vmem:[%s0 + $0x20] sm:$0xff]
    %v29 = vld [vmem:[%s0 + $0x28] sm:$0xff]
    %v30 = vld [vmem:[%s0 + $0x30] sm:$0xff]
    %v31 = vld [vmem:[%s0 + $0x38] sm:$0xff]
    %v32 = vld [vmem:[%s0 + $0x40] sm:$0xff]
    %v33 = vld [vmem:[%s0 + $0x48] sm:$0xff]
    %v34 = vld [vmem:[%s0 + $0x50] sm:$0xff]
    %v35 = vld [vmem:[%s0 + $0x58] sm:$0xff]
    %v36 = vld [vmem:[%s0 + $0x60] sm:$0xff]
    %v37 = vld [vmem:[%s0 + $0x68] sm:$0xff]
    %v38 = vld [vmem:[%s0 + $0x70] sm:$0xff]
    %v39 = vld [vmem:[%s0 + $0x78] sm:$0xff]
    %v40 = vld [vmem:[%s0 + $0x80] sm:$0xff]
    %v41 = vld [vmem:[%s0 + $0x88] sm:$0xff]
    %v42 = vld [vmem:[%s0 + $0x90] sm:$0xff]
    %v43 = vld [vmem:[%s0 + $0x98] sm:$0xff]
    %v44 = vld [vmem:[%s0 + $0xa0] sm:$0xff]
    %v45 = vld [vmem:[%s0 + $0xa8] sm:$0xff]
    %v46 = vld [vmem:[%s0 + $0xb0] sm:$0xff]
    %v47 = vld [vmem:[%s0 + $0xb8] sm:$0xff]
    %v48 = vld [vmem:[%s0 + $0xc0] sm:$0xff]
    %v49 = vld [vmem:[%s0 + $0xc8] sm:$0xff]
    %v50 = vld [vmem:[%s0 + $0xd0] sm:$0xff]
    %v51 = vld [vmem:[%s0 + $0xd8] sm:$0xff]
    %v52 = vld [vmem:[%s0 + $0xe0] sm:$0xff]
    %v53 = vld [vmem:[%s0 + $0xe8] sm:$0xff]
    %v54 = vld [vmem:[%s0 + $0xf0] sm:$0xff]
    %v55 = vld [vmem:[%s0 + $0xf8] sm:$0xff]
    %v56 = vld [vmem:[%s0 + $0x100] sm:$0xff]
    %v57 = vld [vmem:[%s0 + $0x108] sm:$0xff]
    %v58 = vld [vmem:[%s0 + $0x110] sm:$0xff]
    %v59 = vld [vmem:[%s0 + $0x118] sm:$0xff]
    %v60 = vld [vmem:[%s0 + $0x120] sm:$0xff]
    %v61 = vld [vmem:[%s0 + $0x128] sm:$0xff]
    %v62 = vld [vmem:[%s0 + $0x130] sm:$0xff]
    %v63 = vld [vmem:[%s0 + $0x138] sm:$0xff]
    %v64 = vld [vmem:[%s0 + $0x140] sm:$0xff]
    %v65 = vld [vmem:[%s0 + $0x148] sm:$0xff]
    %v66 = vld [vmem:[%s0 + $0x150] sm:$0xff]
    %v67 = vld [vmem:[%s0 + $0x158] sm:$0xff]
    %v68 = vld [vmem:[%s0 + $0x160] sm:$0xff]
    %v69 = vld [vmem:[%s0 + $0x168] sm:$0xff]
    %v70 = vld [vmem:[%s0 + $0x170] sm:$0xff]
    %v71 = vld [vmem:[%s0 + $0x178] sm:$0xff]
    %v72 = vld [vmem:[%s0 + $0x180] sm:$0xff]
    %v73 = vld [vmem:[%s0 + $0x188] sm:$0xff]
    %v74 = vld [vmem:[%s0 + $0x190] sm:$0xff]
    %v75 = vld [vmem:[%s0 + $0x198] sm:$0xff]
    %v76 = vld [vmem:[%s0 + $0x1a0] sm:$0xff]
    %v77 = vld [vmem:[%s0 + $0x1a8] sm:$0xff]
    %v78 = vld [vmem:[%s0 + $0x1b0] sm:$0xff]
    %v79 = vld [vmem:[%s0 + $0x1b8] sm:$0xff]
    %v80 = vld [vmem:[%s0 + $0x1c0] sm:$0xff]
    %v81 = vld [vmem:[%s0 + $0x1c8] sm:$0xff]
    %v82 = vld [vmem:[%s0 + $0x1d0] sm:$0xff]
    %v83 = vld [vmem:[%s0 + $0x1d8] sm:$0xff]
    %v84 = vld [vmem:[%s0 + $0x1e0] sm:$0xff]
    %v85 = vld [vmem:[%s0 + $0x1e8] sm:$0xff]
    %v86 = vld [vmem:[%s0 + $0x1f0] sm:$0xff]
    %v87 = vld [vmem:[%s0 + $0x1f8] sm:$0xff]
    %v88 = vld [vmem:[%s0 + $0x200] sm:$0xff]
    %v89 = vld [vmem:[%s0 + $0x208] sm:$0xff]
    %v90 = vld [vmem:[%s0 + $0x210] sm:$0xff]
    %v91 = vld [vmem:[%s0 + $0x218] sm:$0xff]
    %v92 = vld [vmem:[%s0 + $0x220] sm:$0xff]
    %v93 = vld [vmem:[%s0 + $0x228] sm:$0xff]
    %v94 = vld [vmem:[%s0 + $0x230] sm:$0xff]
    %v95 = vld [vmem:[%s0 + $0x238] sm:$0xff]
    %v96 = vld [vmem:[%s0 + $0x240] sm:$0xff]
    %v97 = vld [vmem:[%s0 + $0x248] sm:$0xff]
    %v98 = vld [vmem:[%s0 + $0x250] sm:$0xff]
    %v99 = vld [vmem:[%s0 + $0x258] sm:$0xff]
    %v100 = vld [vmem:[%s0 + $0x260] sm:$0xff]
    %v101 = vld [vmem:[%s0 + $0x268] sm:$0xff]
    %v102 = vld [vmem:[%s0 + $0x270] sm:$0xff]
    %v103 = vld [vmem:[%s0 + $0x278] sm:$0xff]
    %v104 = vld [vmem:[%s0 + $0x280] sm:$0xff]
    %v105 = vld [vmem:[%s0 + $0x288] sm:$0xff]
    %v106 = vld [vmem:[%s0 + $0x290] sm:$0xff]
    %v107 = vld [vmem:[%s0 + $0x298] sm:$0xff]
    %v108 = vld [vmem:[%s0 + $0x2a0] sm:$0xff]
    %v109 = vld [vmem:[%s0 + $0x2a8] sm:$0xff]
    %v110 = vld [vmem:[%s0 + $0x2b0] sm:$0xff]
    %v111 = vld [vmem:[%s0 + $0x2b8] sm:$0xff]
    %v112 = vld [vmem:[%s0 + $0x2c0] sm:$0xff]
    %v113 = vld [vmem:[%s0 + $0x2c8] sm:$0xff]
    %v114 = vld [vmem:[%s0 + $0x2d0] sm:$0xff]
    %v115 = vld [vmem:[%s0 + $0x2d8] sm:$0xff]
    %v116 = vld [vmem:[%s0 + $0x2e0] sm:$0xff]
    %v117 = vld [vmem:[%s0 + $0x2e8] sm:$0xff]
    %v118 = vld [vmem:[%s0 + $0x2f0] sm:$0xff]
    %v119 = vld [vmem:[%s0 + $0x2f8] sm:$0xff]
    %v120 = vld [vmem:[%s0 + $0x300] sm:$0xff]
    %v121 = vld [vmem:[%s0 + $0x308] sm:$0xff]
    %v122 = vld [vmem:[%s0 + $0x310] sm:$0xff]
    %v123 = vld [vmem:[%s0 + $0x318] sm:$0xff]
    %v124 = vld [vmem:[%s2] sm:$0xff]
    %v125 = vld [vmem:[%s2 + $0x8] sm:$0xff]
    %v126 = vld [vmem:[%s2 + $0x10] sm:$0xff]
    %v127 = vld [vmem:[%s2 + $0x18] sm:$0xff]
    %v128 = vld [vmem:[%s2 + $0x20] sm:$0xff]
    %v129 = vld [vmem:[%s2 + $0x28] sm:$0xff]
    %v130 = vld [vmem:[%s2 + $0x30] sm:$0xff]
    %v131 = vld [vmem:[%s2 + $0x38] sm:$0xff]
    %v132 = vld [vmem:[%s3] sm:$0x1]
    %v134 = vperm.slane %v132, 0
    %vm136 = vcmask 523264
    %v138 = vsel %vm136, %v24, 0
    %v141 = vsel %vm136, %v25, 0
    %v144 = vsel %vm136, %v26, 0
    %v147 = vsel %vm136, %v27, 0
    %v150 = vsel %vm136, %v28, 0
    %v153 = vsel %vm136, %v29, 0
    %v156 = vsel %vm136, %v30, 0
    %v159 = vsel %vm136, %v31, 0
    %v162 = vsel %vm136, %v32, 0
    %v165 = vsel %vm136, %v33, 0
    %v168 = vsel %vm136, %v34, 0
    %v171 = vsel %vm136, %v35, 0
    %v174 = vsel %vm136, %v36, 0
    %v177 = vsel %vm136, %v37, 0
    %v180 = vsel %vm136, %v38, 0
    %v183 = vsel %vm136, %v39, 0
    %v186 = vsel %vm136, %v40, 0
    %v189 = vsel %vm136, %v41, 0
    %v192 = vsel %vm136, %v42, 0
    %v195 = vsel %vm136, %v43, 0
    %v198 = vsel %vm136, %v44, 0
    %v201 = vsel %vm136, %v45, 0
    %v204 = vsel %vm136, %v46, 0
    %v207 = vsel %vm136, %v47, 0
    %v210 = vsel %vm136, %v48, 0
    %v213 = vsel %vm136, %v49, 0
    %v216 = vsel %vm136, %v50, 0
    %v219 = vsel %vm136, %v51, 0
    %v222 = vsel %vm136, %v52, 0
    %v225 = vsel %vm136, %v53, 0
    %v228 = vsel %vm136, %v54, 0
    %v231 = vsel %vm136, %v55, 0
    %v234 = vsel %vm136, %v56, 0
    %v237 = vsel %vm136, %v57, 0
    %v240 = vsel %vm136, %v58, 0
    %v243 = vsel %vm136, %v59, 0
    %v246 = vsel %vm136, %v60, 0
    %v249 = vsel %vm136, %v61, 0
    %v252 = vsel %vm136, %v62, 0
    %v255 = vsel %vm136, %v63, 0
    %v258 = vsel %vm136, %v64, 0
    %v261 = vsel %vm136, %v65, 0
    %v264 = vsel %vm136, %v66, 0
    %v267 = vsel %vm136, %v67, 0
    %v270 = vsel %vm136, %v68, 0
    %v273 = vsel %vm136, %v69, 0
    %v276 = vsel %vm136, %v70, 0
    %v279 = vsel %vm136, %v71, 0
    %v282 = vsel %vm136, %v72, 0
    %v285 = vsel %vm136, %v73, 0
    %v288 = vsel %vm136, %v74, 0
    %v291 = vsel %vm136, %v75, 0
    %v294 = vsel %vm136, %v76, 0
    %v297 = vsel %vm136, %v77, 0
    %v300 = vsel %vm136, %v78, 0
    %v303 = vsel %vm136, %v79, 0
    %v306 = vsel %vm136, %v80, 0
    %v309 = vsel %vm136, %v81, 0
    %v312 = vsel %vm136, %v82, 0
    %v315 = vsel %vm136, %v83, 0
    %v318 = vsel %vm136, %v84, 0
    %v321 = vsel %vm136, %v85, 0
    %v324 = vsel %vm136, %v86, 0
    %v327 = vsel %vm136, %v87, 0
    %v330 = vsel %vm136, %v88, 0
    %v333 = vsel %vm136, %v89, 0
    %v336 = vsel %vm136, %v90, 0
    %v339 = vsel %vm136, %v91, 0
    %v342 = vsel %vm136, %v92, 0
    %v345 = vsel %vm136, %v93, 0
    %v348 = vsel %vm136, %v94, 0
    %v351 = vsel %vm136, %v95, 0
    %v354 = vsel %vm136, %v96, 0
    %v357 = vsel %vm136, %v97, 0
    %v360 = vsel %vm136, %v98, 0
    %v363 = vsel %vm136, %v99, 0
    %v366 = vsel %vm136, %v100, 0
    %v369 = vsel %vm136, %v101, 0
    %v372 = vsel %vm136, %v102, 0
    %v375 = vsel %vm136, %v103, 0
    %v378 = vsel %vm136, %v104, 0
    %v381 = vsel %vm136, %v105, 0
    %v384 = vsel %vm136, %v106, 0
    %v387 = vsel %vm136, %v107, 0
    %v390 = vsel %vm136, %v108, 0
    %v393 = vsel %vm136, %v109, 0
    %v396 = vsel %vm136, %v110, 0
    %v399 = vsel %vm136, %v111, 0
    %v402 = vsel %vm136, %v112, 0
    %v405 = vsel %vm136, %v113, 0
    %v408 = vsel %vm136, %v114, 0
    %v411 = vsel %vm136, %v115, 0
    %v414 = vsel %vm136, %v116, 0
    %v417 = vsel %vm136, %v117, 0
    %v420 = vsel %vm136, %v118, 0
    %v423 = vsel %vm136, %v119, 0
    %v426 = vsel %vm136, %v120, 0
    %v429 = vsel %vm136, %v121, 0
    %v432 = vsel %vm136, %v122, 0
    %v435 = vsel %vm136, %v123, 0
    %437 = vmatpush.msra.mxu0 0.0
    %438 = vmatpush.msra.mxu0 0.0
    %439 = vmatpush.msra.mxu0 0.0
    %440 = vmatpush.msra.mxu0 0.0
    %441 = vmatpush.msra.mxu0 0.0
    %442 = vmatpush.msra.mxu0 0.0
    %443 = vmatpush.msra.mxu0 0.0
    %444 = vmatpush.msra.mxu0 0.0
    %445 = vmatpush.msra.mxu0 %v131
    %446 = vmatpush.msra.mxu0 %v130
    %447 = vmatpush.msra.mxu0 %v129
    %448 = vmatpush.msra.mxu0 %v128
    %449 = vmatpush.msra.mxu0 %v127
    %450 = vmatpush.msra.mxu0 %v126
    %451 = vmatpush.msra.mxu0 %v125
    %452 = vmatpush.msra.mxu0 %v124
    %453 = vmatmul.f32.gmra.mxu0 %v138
    %v454 = vpop.f32.mrf.mxu0
    %v455 = vadd.f32 %v134, %v454
    %456 = vmatmul.f32.gmra.mxu0 %v141
    %v457 = vpop.f32.mrf.mxu0
    %v458 = vadd.f32 %v134, %v457
    %459 = vmatmul.f32.gmra.mxu0 %v144
    %v460 = vpop.f32.mrf.mxu0
    %v461 = vadd.f32 %v134, %v460
    %462 = vmatmul.f32.gmra.mxu0 %v147
    %v463 = vpop.f32.mrf.mxu0
    %v464 = vadd.f32 %v134, %v463
    %465 = vmatmul.f32.gmra.mxu0 %v150
    %v466 = vpop.f32.mrf.mxu0
    %v467 = vadd.f32 %v134, %v466
    %468 = vmatmul.f32.gmra.mxu0 %v153
    %v469 = vpop.f32.mrf.mxu0
    %v470 = vadd.f32 %v134, %v469
    %471 = vmatmul.f32.gmra.mxu0 %v156
    %v472 = vpop.f32.mrf.mxu0
    %v473 = vadd.f32 %v134, %v472
    %474 = vmatmul.f32.gmra.mxu0 %v159
    %v475 = vpop.f32.mrf.mxu0
    %v476 = vadd.f32 %v134, %v475
    %477 = vmatmul.f32.gmra.mxu0 %v162
    %v478 = vpop.f32.mrf.mxu0
    %v479 = vadd.f32 %v134, %v478
    %480 = vmatmul.f32.gmra.mxu0 %v165
    %v481 = vpop.f32.mrf.mxu0
    %v482 = vadd.f32 %v134, %v481
    %483 = vmatmul.f32.gmra.mxu0 %v168
    %v484 = vpop.f32.mrf.mxu0
    %v485 = vadd.f32 %v134, %v484
    %486 = vmatmul.f32.gmra.mxu0 %v171
    %v487 = vpop.f32.mrf.mxu0
    %v488 = vadd.f32 %v134, %v487
    %489 = vmatmul.f32.gmra.mxu0 %v174
    %v490 = vpop.f32.mrf.mxu0
    %v491 = vadd.f32 %v134, %v490
    %492 = vmatmul.f32.gmra.mxu0 %v177
    %v493 = vpop.f32.mrf.mxu0
    %v494 = vadd.f32 %v134, %v493
    %495 = vmatmul.f32.gmra.mxu0 %v180
    %v496 = vpop.f32.mrf.mxu0
    %v497 = vadd.f32 %v134, %v496
    %498 = vmatmul.f32.gmra.mxu0 %v183
    %v499 = vpop.f32.mrf.mxu0
    %v500 = vadd.f32 %v134, %v499
    %501 = vmatmul.f32.gmra.mxu0 %v186
    %v502 = vpop.f32.mrf.mxu0
    %v503 = vadd.f32 %v134, %v502
    %504 = vmatmul.f32.gmra.mxu0 %v189
    %v505 = vpop.f32.mrf.mxu0
    %v506 = vadd.f32 %v134, %v505
    %507 = vmatmul.f32.gmra.mxu0 %v192
    %v508 = vpop.f32.mrf.mxu0
    %v509 = vadd.f32 %v134, %v508
    %510 = vmatmul.f32.gmra.mxu0 %v195
    %v511 = vpop.f32.mrf.mxu0
    %v512 = vadd.f32 %v134, %v511
    %513 = vmatmul.f32.gmra.mxu0 %v198
    %v514 = vpop.f32.mrf.mxu0
    %v515 = vadd.f32 %v134, %v514
    %516 = vmatmul.f32.gmra.mxu0 %v201
    %v517 = vpop.f32.mrf.mxu0
    %v518 = vadd.f32 %v134, %v517
    %519 = vmatmul.f32.gmra.mxu0 %v204
    %v520 = vpop.f32.mrf.mxu0
    %v521 = vadd.f32 %v134, %v520
    %522 = vmatmul.f32.gmra.mxu0 %v207
    %v523 = vpop.f32.mrf.mxu0
    %v524 = vadd.f32 %v134, %v523
    %525 = vmatmul.f32.gmra.mxu0 %v210
    %v526 = vpop.f32.mrf.mxu0
    %v527 = vadd.f32 %v134, %v526
    %528 = vmatmul.f32.gmra.mxu0 %v213
    %v529 = vpop.f32.mrf.mxu0
    %v530 = vadd.f32 %v134, %v529
    %531 = vmatmul.f32.gmra.mxu0 %v216
    %v532 = vpop.f32.mrf.mxu0
    %v533 = vadd.f32 %v134, %v532
    %534 = vmatmul.f32.gmra.mxu0 %v219
    %v535 = vpop.f32.mrf.mxu0
    %v536 = vadd.f32 %v134, %v535
    %537 = vmatmul.f32.gmra.mxu0 %v222
    %v538 = vpop.f32.mrf.mxu0
    %v539 = vadd.f32 %v134, %v538
    %540 = vmatmul.f32.gmra.mxu0 %v225
    %v541 = vpop.f32.mrf.mxu0
    %v542 = vadd.f32 %v134, %v541
    %543 = vmatmul.f32.gmra.mxu0 %v228
    %v544 = vpop.f32.mrf.mxu0
    %v545 = vadd.f32 %v134, %v544
    %546 = vmatmul.f32.gmra.mxu0 %v231
    %v547 = vpop.f32.mrf.mxu0
    %v548 = vadd.f32 %v134, %v547
    %549 = vmatmul.f32.gmra.mxu0 %v234
    %v550 = vpop.f32.mrf.mxu0
    %v551 = vadd.f32 %v134, %v550
    %552 = vmatmul.f32.gmra.mxu0 %v237
    %v553 = vpop.f32.mrf.mxu0
    %v554 = vadd.f32 %v134, %v553
    %555 = vmatmul.f32.gmra.mxu0 %v240
    %v556 = vpop.f32.mrf.mxu0
    %v557 = vadd.f32 %v134, %v556
    %558 = vmatmul.f32.gmra.mxu0 %v243
    %v559 = vpop.f32.mrf.mxu0
    %v560 = vadd.f32 %v134, %v559
    %561 = vmatmul.f32.gmra.mxu0 %v246
    %v562 = vpop.f32.mrf.mxu0
    %v563 = vadd.f32 %v134, %v562
    %564 = vmatmul.f32.gmra.mxu0 %v249
    %v565 = vpop.f32.mrf.mxu0
    %v566 = vadd.f32 %v134, %v565
    %567 = vmatmul.f32.gmra.mxu0 %v252
    %v568 = vpop.f32.mrf.mxu0
    %v569 = vadd.f32 %v134, %v568
    %570 = vmatmul.f32.gmra.mxu0 %v255
    %v571 = vpop.f32.mrf.mxu0
    %v572 = vadd.f32 %v134, %v571
    %573 = vmatmul.f32.gmra.mxu0 %v258
    %v574 = vpop.f32.mrf.mxu0
    %v575 = vadd.f32 %v134, %v574
    %576 = vmatmul.f32.gmra.mxu0 %v261
    %v577 = vpop.f32.mrf.mxu0
    %v578 = vadd.f32 %v134, %v577
    %579 = vmatmul.f32.gmra.mxu0 %v264
    %v580 = vpop.f32.mrf.mxu0
    %v581 = vadd.f32 %v134, %v580
    %582 = vmatmul.f32.gmra.mxu0 %v267
    %v583 = vpop.f32.mrf.mxu0
    %v584 = vadd.f32 %v134, %v583
    %585 = vmatmul.f32.gmra.mxu0 %v270
    %v586 = vpop.f32.mrf.mxu0
    %v587 = vadd.f32 %v134, %v586
    %588 = vmatmul.f32.gmra.mxu0 %v273
    %v589 = vpop.f32.mrf.mxu0
    %v590 = vadd.f32 %v134, %v589
    %591 = vmatmul.f32.gmra.mxu0 %v276
    %v592 = vpop.f32.mrf.mxu0
    %v593 = vadd.f32 %v134, %v592
    %594 = vmatmul.f32.gmra.mxu0 %v279
    %v595 = vpop.f32.mrf.mxu0
    %v596 = vadd.f32 %v134, %v595
    %597 = vmatmul.f32.gmra.mxu0 %v282
    %v598 = vpop.f32.mrf.mxu0
    %v599 = vadd.f32 %v134, %v598
    %600 = vmatmul.f32.gmra.mxu0 %v285
    %v601 = vpop.f32.mrf.mxu0
    %v602 = vadd.f32 %v134, %v601
    %603 = vmatmul.f32.gmra.mxu0 %v288
    %v604 = vpop.f32.mrf.mxu0
    %v605 = vadd.f32 %v134, %v604
    %606 = vmatmul.f32.gmra.mxu0 %v291
    %v607 = vpop.f32.mrf.mxu0
    %v608 = vadd.f32 %v134, %v607
    %609 = vmatmul.f32.gmra.mxu0 %v294
    %v610 = vpop.f32.mrf.mxu0
    %v611 = vadd.f32 %v134, %v610
    %612 = vmatmul.f32.gmra.mxu0 %v297
    %v613 = vpop.f32.mrf.mxu0
    %v614 = vadd.f32 %v134, %v613
    %615 = vmatmul.f32.gmra.mxu0 %v300
    %v616 = vpop.f32.mrf.mxu0
    %v617 = vadd.f32 %v134, %v616
    %618 = vmatmul.f32.gmra.mxu0 %v303
    %v619 = vpop.f32.mrf.mxu0
    %v620 = vadd.f32 %v134, %v619
    %621 = vmatmul.f32.gmra.mxu0 %v306
    %v622 = vpop.f32.mrf.mxu0
    %v623 = vadd.f32 %v134, %v622
    %624 = vmatmul.f32.gmra.mxu0 %v309
    %v625 = vpop.f32.mrf.mxu0
    %v626 = vadd.f32 %v134, %v625
    %627 = vmatmul.f32.gmra.mxu0 %v312
    %v628 = vpop.f32.mrf.mxu0
    %v629 = vadd.f32 %v134, %v628
    %630 = vmatmul.f32.gmra.mxu0 %v315
    %v631 = vpop.f32.mrf.mxu0
    %v632 = vadd.f32 %v134, %v631
    %633 = vmatmul.f32.gmra.mxu0 %v318
    %v634 = vpop.f32.mrf.mxu0
    %v635 = vadd.f32 %v134, %v634
    %636 = vmatmul.f32.gmra.mxu0 %v321
    %v637 = vpop.f32.mrf.mxu0
    %v638 = vadd.f32 %v134, %v637
    %639 = vmatmul.f32.gmra.mxu0 %v324
    %v640 = vpop.f32.mrf.mxu0
    %v641 = vadd.f32 %v134, %v640
    %642 = vmatmul.f32.gmra.mxu0 %v327
    %v643 = vpop.f32.mrf.mxu0
    %v644 = vadd.f32 %v134, %v643
    %645 = vmatmul.f32.gmra.mxu0 %v330
    %v646 = vpop.f32.mrf.mxu0
    %v647 = vadd.f32 %v134, %v646
    %648 = vmatmul.f32.gmra.mxu0 %v333
    %v649 = vpop.f32.mrf.mxu0
    %v650 = vadd.f32 %v134, %v649
    %651 = vmatmul.f32.gmra.mxu0 %v336
    %v652 = vpop.f32.mrf.mxu0
    %v653 = vadd.f32 %v134, %v652
    %654 = vmatmul.f32.gmra.mxu0 %v339
    %v655 = vpop.f32.mrf.mxu0
    %v656 = vadd.f32 %v134, %v655
    %657 = vmatmul.f32.gmra.mxu0 %v342
    %v658 = vpop.f32.mrf.mxu0
    %v659 = vadd.f32 %v134, %v658
    %660 = vmatmul.f32.gmra.mxu0 %v345
    %v661 = vpop.f32.mrf.mxu0
    %v662 = vadd.f32 %v134, %v661
    %663 = vmatmul.f32.gmra.mxu0 %v348
    %v664 = vpop.f32.mrf.mxu0
    %v665 = vadd.f32 %v134, %v664
    %666 = vmatmul.f32.gmra.mxu0 %v351
    %v667 = vpop.f32.mrf.mxu0
    %v668 = vadd.f32 %v134, %v667
    %669 = vmatmul.f32.gmra.mxu0 %v354
    %v670 = vpop.f32.mrf.mxu0
    %v671 = vadd.f32 %v134, %v670
    %672 = vmatmul.f32.gmra.mxu0 %v357
    %v673 = vpop.f32.mrf.mxu0
    %v674 = vadd.f32 %v134, %v673
    %675 = vmatmul.f32.gmra.mxu0 %v360
    %v676 = vpop.f32.mrf.mxu0
    %v677 = vadd.f32 %v134, %v676
    %678 = vmatmul.f32.gmra.mxu0 %v363
    %v679 = vpop.f32.mrf.mxu0
    %v680 = vadd.f32 %v134, %v679
    %681 = vmatmul.f32.gmra.mxu0 %v366
    %v682 = vpop.f32.mrf.mxu0
    %v683 = vadd.f32 %v134, %v682
    %684 = vmatmul.f32.gmra.mxu0 %v369
    %v685 = vpop.f32.mrf.mxu0
    %v686 = vadd.f32 %v134, %v685
    %687 = vmatmul.f32.gmra.mxu0 %v372
    %v688 = vpop.f32.mrf.mxu0
    %v689 = vadd.f32 %v134, %v688
    %690 = vmatmul.f32.gmra.mxu0 %v375
    %v691 = vpop.f32.mrf.mxu0
    %v692 = vadd.f32 %v134, %v691
    %693 = vmatmul.f32.gmra.mxu0 %v378
    %v694 = vpop.f32.mrf.mxu0
    %v695 = vadd.f32 %v134, %v694
    %696 = vmatmul.f32.gmra.mxu0 %v381
    %v697 = vpop.f32.mrf.mxu0
    %v698 = vadd.f32 %v134, %v697
    %699 = vmatmul.f32.gmra.mxu0 %v384
    %v700 = vpop.f32.mrf.mxu0
    %v701 = vadd.f32 %v134, %v700
    %702 = vmatmul.f32.gmra.mxu0 %v387
    %v703 = vpop.f32.mrf.mxu0
    %v704 = vadd.f32 %v134, %v703
    %705 = vmatmul.f32.gmra.mxu0 %v390
    %v706 = vpop.f32.mrf.mxu0
    %v707 = vadd.f32 %v134, %v706
    %708 = vmatmul.f32.gmra.mxu0 %v393
    %v709 = vpop.f32.mrf.mxu0
    %v710 = vadd.f32 %v134, %v709
    %711 = vmatmul.f32.gmra.mxu0 %v396
    %v712 = vpop.f32.mrf.mxu0
    %v713 = vadd.f32 %v134, %v712
    %714 = vmatmul.f32.gmra.mxu0 %v399
    %v715 = vpop.f32.mrf.mxu0
    %v716 = vadd.f32 %v134, %v715
    %717 = vmatmul.f32.gmra.mxu0 %v402
    %v718 = vpop.f32.mrf.mxu0
    %v719 = vadd.f32 %v134, %v718
    %720 = vmatmul.f32.gmra.mxu0 %v405
    %v721 = vpop.f32.mrf.mxu0
    %v722 = vadd.f32 %v134, %v721
    %723 = vmatmul.f32.gmra.mxu0 %v408
    %v724 = vpop.f32.mrf.mxu0
    %v725 = vadd.f32 %v134, %v724
    %726 = vmatmul.f32.gmra.mxu0 %v411
    %v727 = vpop.f32.mrf.mxu0
    %v728 = vadd.f32 %v134, %v727
    %729 = vmatmul.f32.gmra.mxu0 %v414
    %v730 = vpop.f32.mrf.mxu0
    %v731 = vadd.f32 %v134, %v730
    %732 = vmatmul.f32.gmra.mxu0 %v417
    %v733 = vpop.f32.mrf.mxu0
    %v734 = vadd.f32 %v134, %v733
    %735 = vmatmul.f32.gmra.mxu0 %v420
    %v736 = vpop.f32.mrf.mxu0
    %v737 = vadd.f32 %v134, %v736
    %738 = vmatmul.f32.gmra.mxu0 %v423
    %v739 = vpop.f32.mrf.mxu0
    %v740 = vadd.f32 %v134, %v739
    %741 = vmatmul.f32.gmra.mxu0 %v426
    %v742 = vpop.f32.mrf.mxu0
    %v743 = vadd.f32 %v134, %v742
    %744 = vmatmul.f32.gmra.mxu0 %v429
    %v745 = vpop.f32.mrf.mxu0
    %v746 = vadd.f32 %v134, %v745
    %747 = vmatmul.f32.gmra.mxu0 %v432
    %v748 = vpop.f32.mrf.mxu0
    %v749 = vadd.f32 %v134, %v748
    %750 = vmatmul.f32.gmra.mxu0 %v435
    %v751 = vpop.f32.mrf.mxu0
    %v752 = vadd.f32 %v134, %v751
    %753 = vdwg.mxu0
    %v754 = vtanh.pop %v455
    %v755 = vtanh.pop %v458
    %v756 = vtanh.pop %v461
    %v757 = vtanh.pop %v464
    %v758 = vtanh.pop %v467
    %v759 = vtanh.pop %v470
    %v760 = vtanh.pop %v473
    %v761 = vtanh.pop %v476
    %v762 = vtanh.pop %v479
    %v763 = vtanh.pop %v482
    %v764 = vtanh.pop %v485
    %v765 = vtanh.pop %v488
    %v766 = vtanh.pop %v491
    %v767 = vtanh.pop %v494
    %v768 = vtanh.pop %v497
    %v769 = vtanh.pop %v500
    %v770 = vtanh.pop %v503
    %v771 = vtanh.pop %v506
    %v772 = vtanh.pop %v509
    %v773 = vtanh.pop %v512
    %v774 = vtanh.pop %v515
    %v775 = vtanh.pop %v518
    %v776 = vtanh.pop %v521
    %v777 = vtanh.pop %v524
    %v778 = vtanh.pop %v527
    %v779 = vtanh.pop %v530
    %v780 = vtanh.pop %v533
    %v781 = vtanh.pop %v536
    %v782 = vtanh.pop %v539
    %v783 = vtanh.pop %v542
    %v784 = vtanh.pop %v545
    %v785 = vtanh.pop %v548
    %v786 = vtanh.pop %v551
    %v787 = vtanh.pop %v554
    %v788 = vtanh.pop %v557
    %v789 = vtanh.pop %v560
    %v790 = vtanh.pop %v563
    %v791 = vtanh.pop %v566
    %v792 = vtanh.pop %v569
    %v793 = vtanh.pop %v572
    %v794 = vtanh.pop %v575
    %v795 = vtanh.pop %v578
    %v796 = vtanh.pop %v581
    %v797 = vtanh.pop %v584
    %v798 = vtanh.pop %v587
    %v799 = vtanh.pop %v590
    %v800 = vtanh.pop %v593
    %v801 = vtanh.pop %v596
    %v802 = vtanh.pop %v599
    %v803 = vtanh.pop %v602
    %v804 = vtanh.pop %v605
    %v805 = vtanh.pop %v608
    %v806 = vtanh.pop %v611
    %v807 = vtanh.pop %v614
    %v808 = vtanh.pop %v617
    %v809 = vtanh.pop %v620
    %v810 = vtanh.pop %v623
    %v811 = vtanh.pop %v626
    %v812 = vtanh.pop %v629
    %v813 = vtanh.pop %v632
    %v814 = vtanh.pop %v635
    %v815 = vtanh.pop %v638
    %v816 = vtanh.pop %v641
    %v817 = vtanh.pop %v644
    %v818 = vtanh.pop %v647
    %v819 = vtanh.pop %v650
    %v820 = vtanh.pop %v653
    %v821 = vtanh.pop %v656
    %v822 = vtanh.pop %v659
    %v823 = vtanh.pop %v662
    %v824 = vtanh.pop %v665
    %v825 = vtanh.pop %v668
    %v826 = vtanh.pop %v671
    %v827 = vtanh.pop %v674
    %v828 = vtanh.pop %v677
    %v829 = vtanh.pop %v680
    %v830 = vtanh.pop %v683
    %v831 = vtanh.pop %v686
    %v832 = vtanh.pop %v689
    %v833 = vtanh.pop %v692
    %v834 = vtanh.pop %v695
    %v835 = vtanh.pop %v698
    %v836 = vtanh.pop %v701
    %v837 = vtanh.pop %v704
    %v838 = vtanh.pop %v707
    %v839 = vtanh.pop %v710
    %v840 = vtanh.pop %v713
    %v841 = vtanh.pop %v716
    %v842 = vtanh.pop %v719
    %v843 = vtanh.pop %v722
    %v844 = vtanh.pop %v725
    %v845 = vtanh.pop %v728
    %v846 = vtanh.pop %v731
    %v847 = vtanh.pop %v734
    %v848 = vtanh.pop %v737
    %v849 = vtanh.pop %v740
    %v850 = vtanh.pop %v743
    %v851 = vtanh.pop %v746
    %v852 = vtanh.pop %v749
    %v853 = vtanh.pop %v752
    %v854 = vld [vmem:[%s1] sm:$0xff]
    %v855 = vld [vmem:[%s1 + $0x8] sm:$0xff]
    %v856 = vld [vmem:[%s1 + $0x10] sm:$0xff]
    %v857 = vld [vmem:[%s1 + $0x18] sm:$0xff]
    %v858 = vld [vmem:[%s1 + $0x20] sm:$0xff]
    %v859 = vld [vmem:[%s1 + $0x28] sm:$0xff]
    %v860 = vld [vmem:[%s1 + $0x30] sm:$0xff]
    %v861 = vld [vmem:[%s1 + $0x38] sm:$0xff]
    %v862 = vld [vmem:[%s1 + $0x40] sm:$0xff]
    %v863 = vld [vmem:[%s1 + $0x48] sm:$0xff]
    %v864 = vld [vmem:[%s1 + $0x50] sm:$0xff]
    %v865 = vld [vmem:[%s1 + $0x58] sm:$0xff]
    %v866 = vld [vmem:[%s1 + $0x60] sm:$0xff]
    %v867 = vld [vmem:[%s1 + $0x68] sm:$0xff]
    %v868 = vld [vmem:[%s1 + $0x70] sm:$0xff]
    %v869 = vld [vmem:[%s1 + $0x78] sm:$0xff]
    %v870 = vld [vmem:[%s1 + $0x80] sm:$0xff]
    %v871 = vld [vmem:[%s1 + $0x88] sm:$0xff]
    %v872 = vld [vmem:[%s1 + $0x90] sm:$0xff]
    %v873 = vld [vmem:[%s1 + $0x98] sm:$0xff]
    %v874 = vld [vmem:[%s1 + $0xa0] sm:$0xff]
    %v875 = vld [vmem:[%s1 + $0xa8] sm:$0xff]
    %v876 = vld [vmem:[%s1 + $0xb0] sm:$0xff]
    %v877 = vld [vmem:[%s1 + $0xb8] sm:$0xff]
    %v878 = vld [vmem:[%s1 + $0xc0] sm:$0xff]
    %v879 = vld [vmem:[%s1 + $0xc8] sm:$0xff]
    %v880 = vld [vmem:[%s1 + $0xd0] sm:$0xff]
    %v881 = vld [vmem:[%s1 + $0xd8] sm:$0xff]
    %v882 = vld [vmem:[%s1 + $0xe0] sm:$0xff]
    %v883 = vld [vmem:[%s1 + $0xe8] sm:$0xff]
    %v884 = vld [vmem:[%s1 + $0xf0] sm:$0xff]
    %v885 = vld [vmem:[%s1 + $0xf8] sm:$0xff]
    %v886 = vld [vmem:[%s1 + $0x100] sm:$0xff]
    %v887 = vld [vmem:[%s1 + $0x108] sm:$0xff]
    %v888 = vld [vmem:[%s1 + $0x110] sm:$0xff]
    %v889 = vld [vmem:[%s1 + $0x118] sm:$0xff]
    %v890 = vld [vmem:[%s1 + $0x120] sm:$0xff]
    %v891 = vld [vmem:[%s1 + $0x128] sm:$0xff]
    %v892 = vld [vmem:[%s1 + $0x130] sm:$0xff]
    %v893 = vld [vmem:[%s1 + $0x138] sm:$0xff]
    %v894 = vld [vmem:[%s1 + $0x140] sm:$0xff]
    %v895 = vld [vmem:[%s1 + $0x148] sm:$0xff]
    %v896 = vld [vmem:[%s1 + $0x150] sm:$0xff]
    %v897 = vld [vmem:[%s1 + $0x158] sm:$0xff]
    %v898 = vld [vmem:[%s1 + $0x160] sm:$0xff]
    %v899 = vld [vmem:[%s1 + $0x168] sm:$0xff]
    %v900 = vld [vmem:[%s1 + $0x170] sm:$0xff]
    %v901 = vld [vmem:[%s1 + $0x178] sm:$0xff]
    %v902 = vld [vmem:[%s1 + $0x180] sm:$0xff]
    %v903 = vld [vmem:[%s1 + $0x188] sm:$0xff]
    %v904 = vld [vmem:[%s1 + $0x190] sm:$0xff]
    %v905 = vld [vmem:[%s1 + $0x198] sm:$0xff]
    %v906 = vld [vmem:[%s1 + $0x1a0] sm:$0xff]
    %v907 = vld [vmem:[%s1 + $0x1a8] sm:$0xff]
    %v908 = vld [vmem:[%s1 + $0x1b0] sm:$0xff]
    %v909 = vld [vmem:[%s1 + $0x1b8] sm:$0xff]
    %v910 = vld [vmem:[%s1 + $0x1c0] sm:$0xff]
    %v911 = vld [vmem:[%s1 + $0x1c8] sm:$0xff]
    %v912 = vld [vmem:[%s1 + $0x1d0] sm:$0xff]
    %v913 = vld [vmem:[%s1 + $0x1d8] sm:$0xff]
    %v914 = vld [vmem:[%s1 + $0x1e0] sm:$0xff]
    %v915 = vld [vmem:[%s1 + $0x1e8] sm:$0xff]
    %v916 = vld [vmem:[%s1 + $0x1f0] sm:$0xff]
    %v917 = vld [vmem:[%s1 + $0x1f8] sm:$0xff]
    %v918 = vld [vmem:[%s1 + $0x200] sm:$0xff]
    %v919 = vld [vmem:[%s1 + $0x208] sm:$0xff]
    %v920 = vld [vmem:[%s1 + $0x210] sm:$0xff]
    %v921 = vld [vmem:[%s1 + $0x218] sm:$0xff]
    %v922 = vld [vmem:[%s1 + $0x220] sm:$0xff]
    %v923 = vld [vmem:[%s1 + $0x228] sm:$0xff]
    %v924 = vld [vmem:[%s1 + $0x230] sm:$0xff]
    %v925 = vld [vmem:[%s1 + $0x238] sm:$0xff]
    %v926 = vld [vmem:[%s1 + $0x240] sm:$0xff]
    %v927 = vld [vmem:[%s1 + $0x248] sm:$0xff]
    %v928 = vld [vmem:[%s1 + $0x250] sm:$0xff]
    %v929 = vld [vmem:[%s1 + $0x258] sm:$0xff]
    %v930 = vld [vmem:[%s1 + $0x260] sm:$0xff]
    %v931 = vld [vmem:[%s1 + $0x268] sm:$0xff]
    %v932 = vld [vmem:[%s1 + $0x270] sm:$0xff]
    %v933 = vld [vmem:[%s1 + $0x278] sm:$0xff]
    %v934 = vld [vmem:[%s1 + $0x280] sm:$0xff]
    %v935 = vld [vmem:[%s1 + $0x288] sm:$0xff]
    %v936 = vld [vmem:[%s1 + $0x290] sm:$0xff]
    %v937 = vld [vmem:[%s1 + $0x298] sm:$0xff]
    %v938 = vld [vmem:[%s1 + $0x2a0] sm:$0xff]
    %v939 = vld [vmem:[%s1 + $0x2a8] sm:$0xff]
    %v940 = vld [vmem:[%s1 + $0x2b0] sm:$0xff]
    %v941 = vld [vmem:[%s1 + $0x2b8] sm:$0xff]
    %v942 = vld [vmem:[%s1 + $0x2c0] sm:$0xff]
    %v943 = vld [vmem:[%s1 + $0x2c8] sm:$0xff]
    %v944 = vld [vmem:[%s1 + $0x2d0] sm:$0xff]
    %v945 = vld [vmem:[%s1 + $0x2d8] sm:$0xff]
    %v946 = vld [vmem:[%s1 + $0x2e0] sm:$0xff]
    %v947 = vld [vmem:[%s1 + $0x2e8] sm:$0xff]
    %v948 = vld [vmem:[%s1 + $0x2f0] sm:$0xff]
    %v949 = vld [vmem:[%s1 + $0x2f8] sm:$0xff]
    %v950 = vld [vmem:[%s1 + $0x300] sm:$0xff]
    %v951 = vld [vmem:[%s1 + $0x308] sm:$0xff]
    %v952 = vld [vmem:[%s1 + $0x310] sm:$0xff]
    %v953 = vld [vmem:[%s1 + $0x318] sm:$0xff]
    %955 = vset.pattern.permute.xlu0 0
    %956 = vperm.xlu0 %955, %v854
    %v957 = vpop.permute.xlu0 %956
    %960 = vset.pattern.permute.xlu0 0
    %961 = vperm.xlu0 %960, %v855
    %v962 = vpop.permute.xlu0 %961
    %965 = vset.pattern.permute.xlu0 0
    %966 = vperm.xlu0 %965, %v856
    %v967 = vpop.permute.xlu0 %966
    %970 = vset.pattern.permute.xlu0 0
    %971 = vperm.xlu0 %970, %v857
    %v972 = vpop.permute.xlu0 %971
    %975 = vset.pattern.permute.xlu0 0
    %976 = vperm.xlu0 %975, %v858
    %v977 = vpop.permute.xlu0 %976
    %980 = vset.pattern.permute.xlu0 0
    %981 = vperm.xlu0 %980, %v859
    %v982 = vpop.permute.xlu0 %981
    %985 = vset.pattern.permute.xlu0 0
    %986 = vperm.xlu0 %985, %v860
    %v987 = vpop.permute.xlu0 %986
    %990 = vset.pattern.permute.xlu0 0
    %991 = vperm.xlu0 %990, %v861
    %v992 = vpop.permute.xlu0 %991
    %995 = vset.pattern.permute.xlu0 0
    %996 = vperm.xlu0 %995, %v862
    %v997 = vpop.permute.xlu0 %996
    %1000 = vset.pattern.permute.xlu0 0
    %1001 = vperm.xlu0 %1000, %v863
    %v1002 = vpop.permute.xlu0 %1001
    %1005 = vset.pattern.permute.xlu0 0
    %1006 = vperm.xlu0 %1005, %v864
    %v1007 = vpop.permute.xlu0 %1006
    %1010 = vset.pattern.permute.xlu0 0
    %1011 = vperm.xlu0 %1010, %v865
    %v1012 = vpop.permute.xlu0 %1011
    %1015 = vset.pattern.permute.xlu0 0
    %1016 = vperm.xlu0 %1015, %v866
    %v1017 = vpop.permute.xlu0 %1016
    %1020 = vset.pattern.permute.xlu0 0
    %1021 = vperm.xlu0 %1020, %v867
    %v1022 = vpop.permute.xlu0 %1021
    %1025 = vset.pattern.permute.xlu0 0
    %1026 = vperm.xlu0 %1025, %v868
    %v1027 = vpop.permute.xlu0 %1026
    %1030 = vset.pattern.permute.xlu0 0
    %1031 = vperm.xlu0 %1030, %v869
    %v1032 = vpop.permute.xlu0 %1031
    %1035 = vset.pattern.permute.xlu0 0
    %1036 = vperm.xlu0 %1035, %v870
    %v1037 = vpop.permute.xlu0 %1036
    %1040 = vset.pattern.permute.xlu0 0
    %1041 = vperm.xlu0 %1040, %v871
    %v1042 = vpop.permute.xlu0 %1041
    %1045 = vset.pattern.permute.xlu0 0
    %1046 = vperm.xlu0 %1045, %v872
    %v1047 = vpop.permute.xlu0 %1046
    %1050 = vset.pattern.permute.xlu0 0
    %1051 = vperm.xlu0 %1050, %v873
    %v1052 = vpop.permute.xlu0 %1051
    %1055 = vset.pattern.permute.xlu0 0
    %1056 = vperm.xlu0 %1055, %v874
    %v1057 = vpop.permute.xlu0 %1056
    %1060 = vset.pattern.permute.xlu0 0
    %1061 = vperm.xlu0 %1060, %v875
    %v1062 = vpop.permute.xlu0 %1061
    %1065 = vset.pattern.permute.xlu0 0
    %1066 = vperm.xlu0 %1065, %v876
    %v1067 = vpop.permute.xlu0 %1066
    %1070 = vset.pattern.permute.xlu0 0
    %1071 = vperm.xlu0 %1070, %v877
    %v1072 = vpop.permute.xlu0 %1071
    %1075 = vset.pattern.permute.xlu0 0
    %1076 = vperm.xlu0 %1075, %v878
    %v1077 = vpop.permute.xlu0 %1076
    %1080 = vset.pattern.permute.xlu0 0
    %1081 = vperm.xlu0 %1080, %v879
    %v1082 = vpop.permute.xlu0 %1081
    %1085 = vset.pattern.permute.xlu0 0
    %1086 = vperm.xlu0 %1085, %v880
    %v1087 = vpop.permute.xlu0 %1086
    %1090 = vset.pattern.permute.xlu0 0
    %1091 = vperm.xlu0 %1090, %v881
    %v1092 = vpop.permute.xlu0 %1091
    %1095 = vset.pattern.permute.xlu0 0
    %1096 = vperm.xlu0 %1095, %v882
    %v1097 = vpop.permute.xlu0 %1096
    %1100 = vset.pattern.permute.xlu0 0
    %1101 = vperm.xlu0 %1100, %v883
    %v1102 = vpop.permute.xlu0 %1101
    %1105 = vset.pattern.permute.xlu0 0
    %1106 = vperm.xlu0 %1105, %v884
    %v1107 = vpop.permute.xlu0 %1106
    %1110 = vset.pattern.permute.xlu0 0
    %1111 = vperm.xlu0 %1110, %v885
    %v1112 = vpop.permute.xlu0 %1111
    %1115 = vset.pattern.permute.xlu0 0
    %1116 = vperm.xlu0 %1115, %v886
    %v1117 = vpop.permute.xlu0 %1116
    %1120 = vset.pattern.permute.xlu0 0
    %1121 = vperm.xlu0 %1120, %v887
    %v1122 = vpop.permute.xlu0 %1121
    %1125 = vset.pattern.permute.xlu0 0
    %1126 = vperm.xlu0 %1125, %v888
    %v1127 = vpop.permute.xlu0 %1126
    %1130 = vset.pattern.permute.xlu0 0
    %1131 = vperm.xlu0 %1130, %v889
    %v1132 = vpop.permute.xlu0 %1131
    %1135 = vset.pattern.permute.xlu0 0
    %1136 = vperm.xlu0 %1135, %v890
    %v1137 = vpop.permute.xlu0 %1136
    %1140 = vset.pattern.permute.xlu0 0
    %1141 = vperm.xlu0 %1140, %v891
    %v1142 = vpop.permute.xlu0 %1141
    %1145 = vset.pattern.permute.xlu0 0
    %1146 = vperm.xlu0 %1145, %v892
    %v1147 = vpop.permute.xlu0 %1146
    %1150 = vset.pattern.permute.xlu0 0
    %1151 = vperm.xlu0 %1150, %v893
    %v1152 = vpop.permute.xlu0 %1151
    %1155 = vset.pattern.permute.xlu0 0
    %1156 = vperm.xlu0 %1155, %v894
    %v1157 = vpop.permute.xlu0 %1156
    %1160 = vset.pattern.permute.xlu0 0
    %1161 = vperm.xlu0 %1160, %v895
    %v1162 = vpop.permute.xlu0 %1161
    %1165 = vset.pattern.permute.xlu0 0
    %1166 = vperm.xlu0 %1165, %v896
    %v1167 = vpop.permute.xlu0 %1166
    %1170 = vset.pattern.permute.xlu0 0
    %1171 = vperm.xlu0 %1170, %v897
    %v1172 = vpop.permute.xlu0 %1171
    %1175 = vset.pattern.permute.xlu0 0
    %1176 = vperm.xlu0 %1175, %v898
    %v1177 = vpop.permute.xlu0 %1176
    %1180 = vset.pattern.permute.xlu0 0
    %1181 = vperm.xlu0 %1180, %v899
    %v1182 = vpop.permute.xlu0 %1181
    %1185 = vset.pattern.permute.xlu0 0
    %1186 = vperm.xlu0 %1185, %v900
    %v1187 = vpop.permute.xlu0 %1186
    %1190 = vset.pattern.permute.xlu0 0
    %1191 = vperm.xlu0 %1190, %v901
    %v1192 = vpop.permute.xlu0 %1191
    %1195 = vset.pattern.permute.xlu0 0
    %1196 = vperm.xlu0 %1195, %v902
    %v1197 = vpop.permute.xlu0 %1196
    %1200 = vset.pattern.permute.xlu0 0
    %1201 = vperm.xlu0 %1200, %v903
    %v1202 = vpop.permute.xlu0 %1201
    %1205 = vset.pattern.permute.xlu0 0
    %1206 = vperm.xlu0 %1205, %v904
    %v1207 = vpop.permute.xlu0 %1206
    %1210 = vset.pattern.permute.xlu0 0
    %1211 = vperm.xlu0 %1210, %v905
    %v1212 = vpop.permute.xlu0 %1211
    %1215 = vset.pattern.permute.xlu0 0
    %1216 = vperm.xlu0 %1215, %v906
    %v1217 = vpop.permute.xlu0 %1216
    %1220 = vset.pattern.permute.xlu0 0
    %1221 = vperm.xlu0 %1220, %v907
    %v1222 = vpop.permute.xlu0 %1221
    %1225 = vset.pattern.permute.xlu0 0
    %1226 = vperm.xlu0 %1225, %v908
    %v1227 = vpop.permute.xlu0 %1226
    %1230 = vset.pattern.permute.xlu0 0
    %1231 = vperm.xlu0 %1230, %v909
    %v1232 = vpop.permute.xlu0 %1231
    %1235 = vset.pattern.permute.xlu0 0
    %1236 = vperm.xlu0 %1235, %v910
    %v1237 = vpop.permute.xlu0 %1236
    %1240 = vset.pattern.permute.xlu0 0
    %1241 = vperm.xlu0 %1240, %v911
    %v1242 = vpop.permute.xlu0 %1241
    %1245 = vset.pattern.permute.xlu0 0
    %1246 = vperm.xlu0 %1245, %v912
    %v1247 = vpop.permute.xlu0 %1246
    %1250 = vset.pattern.permute.xlu0 0
    %1251 = vperm.xlu0 %1250, %v913
    %v1252 = vpop.permute.xlu0 %1251
    %1255 = vset.pattern.permute.xlu0 0
    %1256 = vperm.xlu0 %1255, %v914
    %v1257 = vpop.permute.xlu0 %1256
    %1260 = vset.pattern.permute.xlu0 0
    %1261 = vperm.xlu0 %1260, %v915
    %v1262 = vpop.permute.xlu0 %1261
    %1265 = vset.pattern.permute.xlu0 0
    %1266 = vperm.xlu0 %1265, %v916
    %v1267 = vpop.permute.xlu0 %1266
    %1270 = vset.pattern.permute.xlu0 0
    %1271 = vperm.xlu0 %1270, %v917
    %v1272 = vpop.permute.xlu0 %1271
    %1275 = vset.pattern.permute.xlu0 0
    %1276 = vperm.xlu0 %1275, %v918
    %v1277 = vpop.permute.xlu0 %1276
    %1280 = vset.pattern.permute.xlu0 0
    %1281 = vperm.xlu0 %1280, %v919
    %v1282 = vpop.permute.xlu0 %1281
    %1285 = vset.pattern.permute.xlu0 0
    %1286 = vperm.xlu0 %1285, %v920
    %v1287 = vpop.permute.xlu0 %1286
    %1290 = vset.pattern.permute.xlu0 0
    %1291 = vperm.xlu0 %1290, %v921
    %v1292 = vpop.permute.xlu0 %1291
    %1295 = vset.pattern.permute.xlu0 0
    %1296 = vperm.xlu0 %1295, %v922
    %v1297 = vpop.permute.xlu0 %1296
    %1300 = vset.pattern.permute.xlu0 0
    %1301 = vperm.xlu0 %1300, %v923
    %v1302 = vpop.permute.xlu0 %1301
    %1305 = vset.pattern.permute.xlu0 0
    %1306 = vperm.xlu0 %1305, %v924
    %v1307 = vpop.permute.xlu0 %1306
    %1310 = vset.pattern.permute.xlu0 0
    %1311 = vperm.xlu0 %1310, %v925
    %v1312 = vpop.permute.xlu0 %1311
    %1315 = vset.pattern.permute.xlu0 0
    %1316 = vperm.xlu0 %1315, %v926
    %v1317 = vpop.permute.xlu0 %1316
    %1320 = vset.pattern.permute.xlu0 0
    %1321 = vperm.xlu0 %1320, %v927
    %v1322 = vpop.permute.xlu0 %1321
    %1325 = vset.pattern.permute.xlu0 0
    %1326 = vperm.xlu0 %1325, %v928
    %v1327 = vpop.permute.xlu0 %1326
    %1330 = vset.pattern.permute.xlu0 0
    %1331 = vperm.xlu0 %1330, %v929
    %v1332 = vpop.permute.xlu0 %1331
    %1335 = vset.pattern.permute.xlu0 0
    %1336 = vperm.xlu0 %1335, %v930
    %v1337 = vpop.permute.xlu0 %1336
    %1340 = vset.pattern.permute.xlu0 0
    %1341 = vperm.xlu0 %1340, %v931
    %v1342 = vpop.permute.xlu0 %1341
    %1345 = vset.pattern.permute.xlu0 0
    %1346 = vperm.xlu0 %1345, %v932
    %v1347 = vpop.permute.xlu0 %1346
    %1350 = vset.pattern.permute.xlu0 0
    %1351 = vperm.xlu0 %1350, %v933
    %v1352 = vpop.permute.xlu0 %1351
    %1355 = vset.pattern.permute.xlu0 0
    %1356 = vperm.xlu0 %1355, %v934
    %v1357 = vpop.permute.xlu0 %1356
    %1360 = vset.pattern.permute.xlu0 0
    %1361 = vperm.xlu0 %1360, %v935
    %v1362 = vpop.permute.xlu0 %1361
    %1365 = vset.pattern.permute.xlu0 0
    %1366 = vperm.xlu0 %1365, %v936
    %v1367 = vpop.permute.xlu0 %1366
    %1370 = vset.pattern.permute.xlu0 0
    %1371 = vperm.xlu0 %1370, %v937
    %v1372 = vpop.permute.xlu0 %1371
    %1375 = vset.pattern.permute.xlu0 0
    %1376 = vperm.xlu0 %1375, %v938
    %v1377 = vpop.permute.xlu0 %1376
    %1380 = vset.pattern.permute.xlu0 0
    %1381 = vperm.xlu0 %1380, %v939
    %v1382 = vpop.permute.xlu0 %1381
    %1385 = vset.pattern.permute.xlu0 0
    %1386 = vperm.xlu0 %1385, %v940
    %v1387 = vpop.permute.xlu0 %1386
    %1390 = vset.pattern.permute.xlu0 0
    %1391 = vperm.xlu0 %1390, %v941
    %v1392 = vpop.permute.xlu0 %1391
    %1395 = vset.pattern.permute.xlu0 0
    %1396 = vperm.xlu0 %1395, %v942
    %v1397 = vpop.permute.xlu0 %1396
    %1400 = vset.pattern.permute.xlu0 0
    %1401 = vperm.xlu0 %1400, %v943
    %v1402 = vpop.permute.xlu0 %1401
    %1405 = vset.pattern.permute.xlu0 0
    %1406 = vperm.xlu0 %1405, %v944
    %v1407 = vpop.permute.xlu0 %1406
    %1410 = vset.pattern.permute.xlu0 0
    %1411 = vperm.xlu0 %1410, %v945
    %v1412 = vpop.permute.xlu0 %1411
    %1415 = vset.pattern.permute.xlu0 0
    %1416 = vperm.xlu0 %1415, %v946
    %v1417 = vpop.permute.xlu0 %1416
    %1420 = vset.pattern.permute.xlu0 0
    %1421 = vperm.xlu0 %1420, %v947
    %v1422 = vpop.permute.xlu0 %1421
    %1425 = vset.pattern.permute.xlu0 0
    %1426 = vperm.xlu0 %1425, %v948
    %v1427 = vpop.permute.xlu0 %1426
    %1430 = vset.pattern.permute.xlu0 0
    %1431 = vperm.xlu0 %1430, %v949
    %v1432 = vpop.permute.xlu0 %1431
    %1435 = vset.pattern.permute.xlu0 0
    %1436 = vperm.xlu0 %1435, %v950
    %v1437 = vpop.permute.xlu0 %1436
    %1440 = vset.pattern.permute.xlu0 0
    %1441 = vperm.xlu0 %1440, %v951
    %v1442 = vpop.permute.xlu0 %1441
    %1445 = vset.pattern.permute.xlu0 0
    %1446 = vperm.xlu0 %1445, %v952
    %v1447 = vpop.permute.xlu0 %1446
    %1450 = vset.pattern.permute.xlu0 0
    %1451 = vperm.xlu0 %1450, %v953
    %v1452 = vpop.permute.xlu0 %1451
    %v1454 = vmul.f32 %v754, %v957
    %v1455 = vmul.f32 %v755, %v962
    %v1456 = vmul.f32 %v756, %v967
    %v1457 = vmul.f32 %v757, %v972
    %v1458 = vmul.f32 %v758, %v977
    %v1459 = vmul.f32 %v759, %v982
    %v1460 = vmul.f32 %v760, %v987
    %v1461 = vmul.f32 %v761, %v992
    %v1462 = vmul.f32 %v762, %v997
    %v1463 = vmul.f32 %v763, %v1002
    %v1464 = vmul.f32 %v764, %v1007
    %v1465 = vmul.f32 %v765, %v1012
    %v1466 = vmul.f32 %v766, %v1017
    %v1467 = vmul.f32 %v767, %v1022
    %v1468 = vmul.f32 %v768, %v1027
    %v1469 = vmul.f32 %v769, %v1032
    %v1470 = vmul.f32 %v770, %v1037
    %v1471 = vmul.f32 %v771, %v1042
    %v1472 = vmul.f32 %v772, %v1047
    %v1473 = vmul.f32 %v773, %v1052
    %v1474 = vmul.f32 %v774, %v1057
    %v1475 = vmul.f32 %v775, %v1062
    %v1476 = vmul.f32 %v776, %v1067
    %v1477 = vmul.f32 %v777, %v1072
    %v1478 = vmul.f32 %v778, %v1077
    %v1479 = vmul.f32 %v779, %v1082
    %v1480 = vmul.f32 %v780, %v1087
    %v1481 = vmul.f32 %v781, %v1092
    %v1482 = vmul.f32 %v782, %v1097
    %v1483 = vmul.f32 %v783, %v1102
    %v1484 = vmul.f32 %v784, %v1107
    %v1485 = vmul.f32 %v785, %v1112
    %v1486 = vmul.f32 %v786, %v1117
    %v1487 = vmul.f32 %v787, %v1122
    %v1488 = vmul.f32 %v788, %v1127
    %v1489 = vmul.f32 %v789, %v1132
    %v1490 = vmul.f32 %v790, %v1137
    %v1491 = vmul.f32 %v791, %v1142
    %v1492 = vmul.f32 %v792, %v1147
    %v1493 = vmul.f32 %v793, %v1152
    %v1494 = vmul.f32 %v794, %v1157
    %v1495 = vmul.f32 %v795, %v1162
    %v1496 = vmul.f32 %v796, %v1167
    %v1497 = vmul.f32 %v797, %v1172
    %v1498 = vmul.f32 %v798, %v1177
    %v1499 = vmul.f32 %v799, %v1182
    %v1500 = vmul.f32 %v800, %v1187
    %v1501 = vmul.f32 %v801, %v1192
    %v1502 = vmul.f32 %v802, %v1197
    %v1503 = vmul.f32 %v803, %v1202
    %v1504 = vmul.f32 %v804, %v1207
    %v1505 = vmul.f32 %v805, %v1212
    %v1506 = vmul.f32 %v806, %v1217
    %v1507 = vmul.f32 %v807, %v1222
    %v1508 = vmul.f32 %v808, %v1227
    %v1509 = vmul.f32 %v809, %v1232
    %v1510 = vmul.f32 %v810, %v1237
    %v1511 = vmul.f32 %v811, %v1242
    %v1512 = vmul.f32 %v812, %v1247
    %v1513 = vmul.f32 %v813, %v1252
    %v1514 = vmul.f32 %v814, %v1257
    %v1515 = vmul.f32 %v815, %v1262
    %v1516 = vmul.f32 %v816, %v1267
    %v1517 = vmul.f32 %v817, %v1272
    %v1518 = vmul.f32 %v818, %v1277
    %v1519 = vmul.f32 %v819, %v1282
    %v1520 = vmul.f32 %v820, %v1287
    %v1521 = vmul.f32 %v821, %v1292
    %v1522 = vmul.f32 %v822, %v1297
    %v1523 = vmul.f32 %v823, %v1302
    %v1524 = vmul.f32 %v824, %v1307
    %v1525 = vmul.f32 %v825, %v1312
    %v1526 = vmul.f32 %v826, %v1317
    %v1527 = vmul.f32 %v827, %v1322
    %v1528 = vmul.f32 %v828, %v1327
    %v1529 = vmul.f32 %v829, %v1332
    %v1530 = vmul.f32 %v830, %v1337
    %v1531 = vmul.f32 %v831, %v1342
    %v1532 = vmul.f32 %v832, %v1347
    %v1533 = vmul.f32 %v833, %v1352
    %v1534 = vmul.f32 %v834, %v1357
    %v1535 = vmul.f32 %v835, %v1362
    %v1536 = vmul.f32 %v836, %v1367
    %v1537 = vmul.f32 %v837, %v1372
    %v1538 = vmul.f32 %v838, %v1377
    %v1539 = vmul.f32 %v839, %v1382
    %v1540 = vmul.f32 %v840, %v1387
    %v1541 = vmul.f32 %v841, %v1392
    %v1542 = vmul.f32 %v842, %v1397
    %v1543 = vmul.f32 %v843, %v1402
    %v1544 = vmul.f32 %v844, %v1407
    %v1545 = vmul.f32 %v845, %v1412
    %v1546 = vmul.f32 %v846, %v1417
    %v1547 = vmul.f32 %v847, %v1422
    %v1548 = vmul.f32 %v848, %v1427
    %v1549 = vmul.f32 %v849, %v1432
    %v1550 = vmul.f32 %v850, %v1437
    %v1551 = vmul.f32 %v851, %v1442
    %v1552 = vmul.f32 %v852, %v1447
    %v1553 = vmul.f32 %v853, %v1452
    %v1554 = vld [vmem:[%s4] sm:$0xff]
    %v1555 = vld [vmem:[%s4 + $0x8] sm:$0xff]
    %v1556 = vld [vmem:[%s4 + $0x10] sm:$0xff]
    %v1557 = vld [vmem:[%s4 + $0x18] sm:$0xff]
    %v1558 = vld [vmem:[%s4 + $0x20] sm:$0xff]
    %v1559 = vld [vmem:[%s4 + $0x28] sm:$0xff]
    %v1560 = vld [vmem:[%s4 + $0x30] sm:$0xff]
    %v1561 = vld [vmem:[%s4 + $0x38] sm:$0xff]
    %v1562 = vld [vmem:[%s4 + $0x40] sm:$0xff]
    %v1563 = vld [vmem:[%s4 + $0x48] sm:$0xff]
    %v1564 = vld [vmem:[%s4 + $0x50] sm:$0xff]
    %v1565 = vld [vmem:[%s4 + $0x58] sm:$0xff]
    %v1566 = vld [vmem:[%s4 + $0x60] sm:$0xff]
    %v1567 = vld [vmem:[%s4 + $0x68] sm:$0xff]
    %v1568 = vld [vmem:[%s4 + $0x70] sm:$0xff]
    %v1569 = vld [vmem:[%s4 + $0x78] sm:$0xff]
    %v1570 = vld [vmem:[%s5] sm:$0x1]
    %v1572 = vperm.slane %v1570, 0
    %1574 = vmatpush.msra.mxu0 %v1569
    %1575 = vmatpush.msra.mxu0 %v1568
    %1576 = vmatpush.msra.mxu0 %v1567
    %1577 = vmatpush.msra.mxu0 %v1566
    %1578 = vmatpush.msra.mxu0 %v1565
    %1579 = vmatpush.msra.mxu0 %v1564
    %1580 = vmatpush.msra.mxu0 %v1563
    %1581 = vmatpush.msra.mxu0 %v1562
    %1582 = vmatpush.msra.mxu0 %v1561
    %1583 = vmatpush.msra.mxu0 %v1560
    %1584 = vmatpush.msra.mxu0 %v1559
    %1585 = vmatpush.msra.mxu0 %v1558
    %1586 = vmatpush.msra.mxu0 %v1557
    %1587 = vmatpush.msra.mxu0 %v1556
    %1588 = vmatpush.msra.mxu0 %v1555
    %1589 = vmatpush.msra.mxu0 %v1554
    %1590 = vmatmul.f32.gmra.mxu0 %v1454
    %v1591 = vpop.f32.mrf.mxu0
    %v1592 = vadd.f32 %v1572, %v1591
    %1593 = vmatmul.f32.gmra.mxu0 %v1455
    %v1594 = vpop.f32.mrf.mxu0
    %v1595 = vadd.f32 %v1572, %v1594
    %1596 = vmatmul.f32.gmra.mxu0 %v1456
    %v1597 = vpop.f32.mrf.mxu0
    %v1598 = vadd.f32 %v1572, %v1597
    %1599 = vmatmul.f32.gmra.mxu0 %v1457
    %v1600 = vpop.f32.mrf.mxu0
    %v1601 = vadd.f32 %v1572, %v1600
    %1602 = vmatmul.f32.gmra.mxu0 %v1458
    %v1603 = vpop.f32.mrf.mxu0
    %v1604 = vadd.f32 %v1572, %v1603
    %1605 = vmatmul.f32.gmra.mxu0 %v1459
    %v1606 = vpop.f32.mrf.mxu0
    %v1607 = vadd.f32 %v1572, %v1606
    %1608 = vmatmul.f32.gmra.mxu0 %v1460
    %v1609 = vpop.f32.mrf.mxu0
    %v1610 = vadd.f32 %v1572, %v1609
    %1611 = vmatmul.f32.gmra.mxu0 %v1461
    %v1612 = vpop.f32.mrf.mxu0
    %v1613 = vadd.f32 %v1572, %v1612
    %1614 = vmatmul.f32.gmra.mxu0 %v1462
    %v1615 = vpop.f32.mrf.mxu0
    %v1616 = vadd.f32 %v1572, %v1615
    %1617 = vmatmul.f32.gmra.mxu0 %v1463
    %v1618 = vpop.f32.mrf.mxu0
    %v1619 = vadd.f32 %v1572, %v1618
    %1620 = vmatmul.f32.gmra.mxu0 %v1464
    %v1621 = vpop.f32.mrf.mxu0
    %v1622 = vadd.f32 %v1572, %v1621
    %1623 = vmatmul.f32.gmra.mxu0 %v1465
    %v1624 = vpop.f32.mrf.mxu0
    %v1625 = vadd.f32 %v1572, %v1624
    %1626 = vmatmul.f32.gmra.mxu0 %v1466
    %v1627 = vpop.f32.mrf.mxu0
    %v1628 = vadd.f32 %v1572, %v1627
    %1629 = vmatmul.f32.gmra.mxu0 %v1467
    %v1630 = vpop.f32.mrf.mxu0
    %v1631 = vadd.f32 %v1572, %v1630
    %1632 = vmatmul.f32.gmra.mxu0 %v1468
    %v1633 = vpop.f32.mrf.mxu0
    %v1634 = vadd.f32 %v1572, %v1633
    %1635 = vmatmul.f32.gmra.mxu0 %v1469
    %v1636 = vpop.f32.mrf.mxu0
    %v1637 = vadd.f32 %v1572, %v1636
    %1638 = vmatmul.f32.gmra.mxu0 %v1470
    %v1639 = vpop.f32.mrf.mxu0
    %v1640 = vadd.f32 %v1572, %v1639
    %1641 = vmatmul.f32.gmra.mxu0 %v1471
    %v1642 = vpop.f32.mrf.mxu0
    %v1643 = vadd.f32 %v1572, %v1642
    %1644 = vmatmul.f32.gmra.mxu0 %v1472
    %v1645 = vpop.f32.mrf.mxu0
    %v1646 = vadd.f32 %v1572, %v1645
    %1647 = vmatmul.f32.gmra.mxu0 %v1473
    %v1648 = vpop.f32.mrf.mxu0
    %v1649 = vadd.f32 %v1572, %v1648
    %1650 = vmatmul.f32.gmra.mxu0 %v1474
    %v1651 = vpop.f32.mrf.mxu0
    %v1652 = vadd.f32 %v1572, %v1651
    %1653 = vmatmul.f32.gmra.mxu0 %v1475
    %v1654 = vpop.f32.mrf.mxu0
    %v1655 = vadd.f32 %v1572, %v1654
    %1656 = vmatmul.f32.gmra.mxu0 %v1476
    %v1657 = vpop.f32.mrf.mxu0
    %v1658 = vadd.f32 %v1572, %v1657
    %1659 = vmatmul.f32.gmra.mxu0 %v1477
    %v1660 = vpop.f32.mrf.mxu0
    %v1661 = vadd.f32 %v1572, %v1660
    %1662 = vmatmul.f32.gmra.mxu0 %v1478
    %v1663 = vpop.f32.mrf.mxu0
    %v1664 = vadd.f32 %v1572, %v1663
    %1665 = vmatmul.f32.gmra.mxu0 %v1479
    %v1666 = vpop.f32.mrf.mxu0
    %v1667 = vadd.f32 %v1572, %v1666
    %1668 = vmatmul.f32.gmra.mxu0 %v1480
    %v1669 = vpop.f32.mrf.mxu0
    %v1670 = vadd.f32 %v1572, %v1669
    %1671 = vmatmul.f32.gmra.mxu0 %v1481
    %v1672 = vpop.f32.mrf.mxu0
    %v1673 = vadd.f32 %v1572, %v1672
    %1674 = vmatmul.f32.gmra.mxu0 %v1482
    %v1675 = vpop.f32.mrf.mxu0
    %v1676 = vadd.f32 %v1572, %v1675
    %1677 = vmatmul.f32.gmra.mxu0 %v1483
    %v1678 = vpop.f32.mrf.mxu0
    %v1679 = vadd.f32 %v1572, %v1678
    %1680 = vmatmul.f32.gmra.mxu0 %v1484
    %v1681 = vpop.f32.mrf.mxu0
    %v1682 = vadd.f32 %v1572, %v1681
    %1683 = vmatmul.f32.gmra.mxu0 %v1485
    %v1684 = vpop.f32.mrf.mxu0
    %v1685 = vadd.f32 %v1572, %v1684
    %1686 = vmatmul.f32.gmra.mxu0 %v1486
    %v1687 = vpop.f32.mrf.mxu0
    %v1688 = vadd.f32 %v1572, %v1687
    %1689 = vmatmul.f32.gmra.mxu0 %v1487
    %v1690 = vpop.f32.mrf.mxu0
    %v1691 = vadd.f32 %v1572, %v1690
    %1692 = vmatmul.f32.gmra.mxu0 %v1488
    %v1693 = vpop.f32.mrf.mxu0
    %v1694 = vadd.f32 %v1572, %v1693
    %1695 = vmatmul.f32.gmra.mxu0 %v1489
    %v1696 = vpop.f32.mrf.mxu0
    %v1697 = vadd.f32 %v1572, %v1696
    %1698 = vmatmul.f32.gmra.mxu0 %v1490
    %v1699 = vpop.f32.mrf.mxu0
    %v1700 = vadd.f32 %v1572, %v1699
    %1701 = vmatmul.f32.gmra.mxu0 %v1491
    %v1702 = vpop.f32.mrf.mxu0
    %v1703 = vadd.f32 %v1572, %v1702
    %1704 = vmatmul.f32.gmra.mxu0 %v1492
    %v1705 = vpop.f32.mrf.mxu0
    %v1706 = vadd.f32 %v1572, %v1705
    %1707 = vmatmul.f32.gmra.mxu0 %v1493
    %v1708 = vpop.f32.mrf.mxu0
    %v1709 = vadd.f32 %v1572, %v1708
    %1710 = vmatmul.f32.gmra.mxu0 %v1494
    %v1711 = vpop.f32.mrf.mxu0
    %v1712 = vadd.f32 %v1572, %v1711
    %1713 = vmatmul.f32.gmra.mxu0 %v1495
    %v1714 = vpop.f32.mrf.mxu0
    %v1715 = vadd.f32 %v1572, %v1714
    %1716 = vmatmul.f32.gmra.mxu0 %v1496
    %v1717 = vpop.f32.mrf.mxu0
    %v1718 = vadd.f32 %v1572, %v1717
    %1719 = vmatmul.f32.gmra.mxu0 %v1497
    %v1720 = vpop.f32.mrf.mxu0
    %v1721 = vadd.f32 %v1572, %v1720
    %1722 = vmatmul.f32.gmra.mxu0 %v1498
    %v1723 = vpop.f32.mrf.mxu0
    %v1724 = vadd.f32 %v1572, %v1723
    %1725 = vmatmul.f32.gmra.mxu0 %v1499
    %v1726 = vpop.f32.mrf.mxu0
    %v1727 = vadd.f32 %v1572, %v1726
    %1728 = vmatmul.f32.gmra.mxu0 %v1500
    %v1729 = vpop.f32.mrf.mxu0
    %v1730 = vadd.f32 %v1572, %v1729
    %1731 = vmatmul.f32.gmra.mxu0 %v1501
    %v1732 = vpop.f32.mrf.mxu0
    %v1733 = vadd.f32 %v1572, %v1732
    %1734 = vmatmul.f32.gmra.mxu0 %v1502
    %v1735 = vpop.f32.mrf.mxu0
    %v1736 = vadd.f32 %v1572, %v1735
    %1737 = vmatmul.f32.gmra.mxu0 %v1503
    %v1738 = vpop.f32.mrf.mxu0
    %v1739 = vadd.f32 %v1572, %v1738
    %1740 = vmatmul.f32.gmra.mxu0 %v1504
    %v1741 = vpop.f32.mrf.mxu0
    %v1742 = vadd.f32 %v1572, %v1741
    %1743 = vmatmul.f32.gmra.mxu0 %v1505
    %v1744 = vpop.f32.mrf.mxu0
    %v1745 = vadd.f32 %v1572, %v1744
    %1746 = vmatmul.f32.gmra.mxu0 %v1506
    %v1747 = vpop.f32.mrf.mxu0
    %v1748 = vadd.f32 %v1572, %v1747
    %1749 = vmatmul.f32.gmra.mxu0 %v1507
    %v1750 = vpop.f32.mrf.mxu0
    %v1751 = vadd.f32 %v1572, %v1750
    %1752 = vmatmul.f32.gmra.mxu0 %v1508
    %v1753 = vpop.f32.mrf.mxu0
    %v1754 = vadd.f32 %v1572, %v1753
    %1755 = vmatmul.f32.gmra.mxu0 %v1509
    %v1756 = vpop.f32.mrf.mxu0
    %v1757 = vadd.f32 %v1572, %v1756
    %1758 = vmatmul.f32.gmra.mxu0 %v1510
    %v1759 = vpop.f32.mrf.mxu0
    %v1760 = vadd.f32 %v1572, %v1759
    %1761 = vmatmul.f32.gmra.mxu0 %v1511
    %v1762 = vpop.f32.mrf.mxu0
    %v1763 = vadd.f32 %v1572, %v1762
    %1764 = vmatmul.f32.gmra.mxu0 %v1512
    %v1765 = vpop.f32.mrf.mxu0
    %v1766 = vadd.f32 %v1572, %v1765
    %1767 = vmatmul.f32.gmra.mxu0 %v1513
    %v1768 = vpop.f32.mrf.mxu0
    %v1769 = vadd.f32 %v1572, %v1768
    %1770 = vmatmul.f32.gmra.mxu0 %v1514
    %v1771 = vpop.f32.mrf.mxu0
    %v1772 = vadd.f32 %v1572, %v1771
    %1773 = vmatmul.f32.gmra.mxu0 %v1515
    %v1774 = vpop.f32.mrf.mxu0
    %v1775 = vadd.f32 %v1572, %v1774
    %1776 = vmatmul.f32.gmra.mxu0 %v1516
    %v1777 = vpop.f32.mrf.mxu0
    %v1778 = vadd.f32 %v1572, %v1777
    %1779 = vmatmul.f32.gmra.mxu0 %v1517
    %v1780 = vpop.f32.mrf.mxu0
    %v1781 = vadd.f32 %v1572, %v1780
    %1782 = vmatmul.f32.gmra.mxu0 %v1518
    %v1783 = vpop.f32.mrf.mxu0
    %v1784 = vadd.f32 %v1572, %v1783
    %1785 = vmatmul.f32.gmra.mxu0 %v1519
    %v1786 = vpop.f32.mrf.mxu0
    %v1787 = vadd.f32 %v1572, %v1786
    %1788 = vmatmul.f32.gmra.mxu0 %v1520
    %v1789 = vpop.f32.mrf.mxu0
    %v1790 = vadd.f32 %v1572, %v1789
    %1791 = vmatmul.f32.gmra.mxu0 %v1521
    %v1792 = vpop.f32.mrf.mxu0
    %v1793 = vadd.f32 %v1572, %v1792
    %1794 = vmatmul.f32.gmra.mxu0 %v1522
    %v1795 = vpop.f32.mrf.mxu0
    %v1796 = vadd.f32 %v1572, %v1795
    %1797 = vmatmul.f32.gmra.mxu0 %v1523
    %v1798 = vpop.f32.mrf.mxu0
    %v1799 = vadd.f32 %v1572, %v1798
    %1800 = vmatmul.f32.gmra.mxu0 %v1524
    %v1801 = vpop.f32.mrf.mxu0
    %v1802 = vadd.f32 %v1572, %v1801
    %1803 = vmatmul.f32.gmra.mxu0 %v1525
    %v1804 = vpop.f32.mrf.mxu0
    %v1805 = vadd.f32 %v1572, %v1804
    %1806 = vmatmul.f32.gmra.mxu0 %v1526
    %v1807 = vpop.f32.mrf.mxu0
    %v1808 = vadd.f32 %v1572, %v1807
    %1809 = vmatmul.f32.gmra.mxu0 %v1527
    %v1810 = vpop.f32.mrf.mxu0
    %v1811 = vadd.f32 %v1572, %v1810
    %1812 = vmatmul.f32.gmra.mxu0 %v1528
    %v1813 = vpop.f32.mrf.mxu0
    %v1814 = vadd.f32 %v1572, %v1813
    %1815 = vmatmul.f32.gmra.mxu0 %v1529
    %v1816 = vpop.f32.mrf.mxu0
    %v1817 = vadd.f32 %v1572, %v1816
    %1818 = vmatmul.f32.gmra.mxu0 %v1530
    %v1819 = vpop.f32.mrf.mxu0
    %v1820 = vadd.f32 %v1572, %v1819
    %1821 = vmatmul.f32.gmra.mxu0 %v1531
    %v1822 = vpop.f32.mrf.mxu0
    %v1823 = vadd.f32 %v1572, %v1822
    %1824 = vmatmul.f32.gmra.mxu0 %v1532
    %v1825 = vpop.f32.mrf.mxu0
    %v1826 = vadd.f32 %v1572, %v1825
    %1827 = vmatmul.f32.gmra.mxu0 %v1533
    %v1828 = vpop.f32.mrf.mxu0
    %v1829 = vadd.f32 %v1572, %v1828
    %1830 = vmatmul.f32.gmra.mxu0 %v1534
    %v1831 = vpop.f32.mrf.mxu0
    %v1832 = vadd.f32 %v1572, %v1831
    %1833 = vmatmul.f32.gmra.mxu0 %v1535
    %v1834 = vpop.f32.mrf.mxu0
    %v1835 = vadd.f32 %v1572, %v1834
    %1836 = vmatmul.f32.gmra.mxu0 %v1536
    %v1837 = vpop.f32.mrf.mxu0
    %v1838 = vadd.f32 %v1572, %v1837
    %1839 = vmatmul.f32.gmra.mxu0 %v1537
    %v1840 = vpop.f32.mrf.mxu0
    %v1841 = vadd.f32 %v1572, %v1840
    %1842 = vmatmul.f32.gmra.mxu0 %v1538
    %v1843 = vpop.f32.mrf.mxu0
    %v1844 = vadd.f32 %v1572, %v1843
    %1845 = vmatmul.f32.gmra.mxu0 %v1539
    %v1846 = vpop.f32.mrf.mxu0
    %v1847 = vadd.f32 %v1572, %v1846
    %1848 = vmatmul.f32.gmra.mxu0 %v1540
    %v1849 = vpop.f32.mrf.mxu0
    %v1850 = vadd.f32 %v1572, %v1849
    %1851 = vmatmul.f32.gmra.mxu0 %v1541
    %v1852 = vpop.f32.mrf.mxu0
    %v1853 = vadd.f32 %v1572, %v1852
    %1854 = vmatmul.f32.gmra.mxu0 %v1542
    %v1855 = vpop.f32.mrf.mxu0
    %v1856 = vadd.f32 %v1572, %v1855
    %1857 = vmatmul.f32.gmra.mxu0 %v1543
    %v1858 = vpop.f32.mrf.mxu0
    %v1859 = vadd.f32 %v1572, %v1858
    %1860 = vmatmul.f32.gmra.mxu0 %v1544
    %v1861 = vpop.f32.mrf.mxu0
    %v1862 = vadd.f32 %v1572, %v1861
    %1863 = vmatmul.f32.gmra.mxu0 %v1545
    %v1864 = vpop.f32.mrf.mxu0
    %v1865 = vadd.f32 %v1572, %v1864
    %1866 = vmatmul.f32.gmra.mxu0 %v1546
    %v1867 = vpop.f32.mrf.mxu0
    %v1868 = vadd.f32 %v1572, %v1867
    %1869 = vmatmul.f32.gmra.mxu0 %v1547
    %v1870 = vpop.f32.mrf.mxu0
    %v1871 = vadd.f32 %v1572, %v1870
    %1872 = vmatmul.f32.gmra.mxu0 %v1548
    %v1873 = vpop.f32.mrf.mxu0
    %v1874 = vadd.f32 %v1572, %v1873
    %1875 = vmatmul.f32.gmra.mxu0 %v1549
    %v1876 = vpop.f32.mrf.mxu0
    %v1877 = vadd.f32 %v1572, %v1876
    %1878 = vmatmul.f32.gmra.mxu0 %v1550
    %v1879 = vpop.f32.mrf.mxu0
    %v1880 = vadd.f32 %v1572, %v1879
    %1881 = vmatmul.f32.gmra.mxu0 %v1551
    %v1882 = vpop.f32.mrf.mxu0
    %v1883 = vadd.f32 %v1572, %v1882
    %1884 = vmatmul.f32.gmra.mxu0 %v1552
    %v1885 = vpop.f32.mrf.mxu0
    %v1886 = vadd.f32 %v1572, %v1885
    %1887 = vmatmul.f32.gmra.mxu0 %v1553
    %v1888 = vpop.f32.mrf.mxu0
    %v1889 = vadd.f32 %v1572, %v1888
    %1890 = vdwg.mxu0
    %v1891 = vtanh.pop %v1592
    %v1892 = vtanh.pop %v1595
    %v1893 = vtanh.pop %v1598
    %v1894 = vtanh.pop %v1601
    %v1895 = vtanh.pop %v1604
    %v1896 = vtanh.pop %v1607
    %v1897 = vtanh.pop %v1610
    %v1898 = vtanh.pop %v1613
    %v1899 = vtanh.pop %v1616
    %v1900 = vtanh.pop %v1619
    %v1901 = vtanh.pop %v1622
    %v1902 = vtanh.pop %v1625
    %v1903 = vtanh.pop %v1628
    %v1904 = vtanh.pop %v1631
    %v1905 = vtanh.pop %v1634
    %v1906 = vtanh.pop %v1637
    %v1907 = vtanh.pop %v1640
    %v1908 = vtanh.pop %v1643
    %v1909 = vtanh.pop %v1646
    %v1910 = vtanh.pop %v1649
    %v1911 = vtanh.pop %v1652
    %v1912 = vtanh.pop %v1655
    %v1913 = vtanh.pop %v1658
    %v1914 = vtanh.pop %v1661
    %v1915 = vtanh.pop %v1664
    %v1916 = vtanh.pop %v1667
    %v1917 = vtanh.pop %v1670
    %v1918 = vtanh.pop %v1673
    %v1919 = vtanh.pop %v1676
    %v1920 = vtanh.pop %v1679
    %v1921 = vtanh.pop %v1682
    %v1922 = vtanh.pop %v1685
    %v1923 = vtanh.pop %v1688
    %v1924 = vtanh.pop %v1691
    %v1925 = vtanh.pop %v1694
    %v1926 = vtanh.pop %v1697
    %v1927 = vtanh.pop %v1700
    %v1928 = vtanh.pop %v1703
    %v1929 = vtanh.pop %v1706
    %v1930 = vtanh.pop %v1709
    %v1931 = vtanh.pop %v1712
    %v1932 = vtanh.pop %v1715
    %v1933 = vtanh.pop %v1718
    %v1934 = vtanh.pop %v1721
    %v1935 = vtanh.pop %v1724
    %v1936 = vtanh.pop %v1727
    %v1937 = vtanh.pop %v1730
    %v1938 = vtanh.pop %v1733
    %v1939 = vtanh.pop %v1736
    %v1940 = vtanh.pop %v1739
    %v1941 = vtanh.pop %v1742
    %v1942 = vtanh.pop %v1745
    %v1943 = vtanh.pop %v1748
    %v1944 = vtanh.pop %v1751
    %v1945 = vtanh.pop %v1754
    %v1946 = vtanh.pop %v1757
    %v1947 = vtanh.pop %v1760
    %v1948 = vtanh.pop %v1763
    %v1949 = vtanh.pop %v1766
    %v1950 = vtanh.pop %v1769
    %v1951 = vtanh.pop %v1772
    %v1952 = vtanh.pop %v1775
    %v1953 = vtanh.pop %v1778
    %v1954 = vtanh.pop %v1781
    %v1955 = vtanh.pop %v1784
    %v1956 = vtanh.pop %v1787
    %v1957 = vtanh.pop %v1790
    %v1958 = vtanh.pop %v1793
    %v1959 = vtanh.pop %v1796
    %v1960 = vtanh.pop %v1799
    %v1961 = vtanh.pop %v1802
    %v1962 = vtanh.pop %v1805
    %v1963 = vtanh.pop %v1808
    %v1964 = vtanh.pop %v1811
    %v1965 = vtanh.pop %v1814
    %v1966 = vtanh.pop %v1817
    %v1967 = vtanh.pop %v1820
    %v1968 = vtanh.pop %v1823
    %v1969 = vtanh.pop %v1826
    %v1970 = vtanh.pop %v1829
    %v1971 = vtanh.pop %v1832
    %v1972 = vtanh.pop %v1835
    %v1973 = vtanh.pop %v1838
    %v1974 = vtanh.pop %v1841
    %v1975 = vtanh.pop %v1844
    %v1976 = vtanh.pop %v1847
    %v1977 = vtanh.pop %v1850
    %v1978 = vtanh.pop %v1853
    %v1979 = vtanh.pop %v1856
    %v1980 = vtanh.pop %v1859
    %v1981 = vtanh.pop %v1862
    %v1982 = vtanh.pop %v1865
    %v1983 = vtanh.pop %v1868
    %v1984 = vtanh.pop %v1871
    %v1985 = vtanh.pop %v1874
    %v1986 = vtanh.pop %v1877
    %v1987 = vtanh.pop %v1880
    %v1988 = vtanh.pop %v1883
    %v1989 = vtanh.pop %v1886
    %v1990 = vtanh.pop %v1889
    %1991 = vst [vmem:[#allocation2] sm:$0xff] %v1891
    %1992 = vst [vmem:[#allocation2 + $0x8] sm:$0xff] %v1892
    %1993 = vst [vmem:[#allocation2 + $0x10] sm:$0xff] %v1893
    %1994 = vst [vmem:[#allocation2 + $0x18] sm:$0xff] %v1894
    %1995 = vst [vmem:[#allocation2 + $0x20] sm:$0xff] %v1895
    %1996 = vst [vmem:[#allocation2 + $0x28] sm:$0xff] %v1896
    %1997 = vst [vmem:[#allocation2 + $0x30] sm:$0xff] %v1897
    %1998 = vst [vmem:[#allocation2 + $0x38] sm:$0xff] %v1898
    %1999 = vst [vmem:[#allocation2 + $0x40] sm:$0xff] %v1899
    %2000 = vst [vmem:[#allocation2 + $0x48] sm:$0xff] %v1900
    %2001 = vst [vmem:[#allocation2 + $0x50] sm:$0xff] %v1901
    %2002 = vst [vmem:[#allocation2 + $0x58] sm:$0xff] %v1902
    %2003 = vst [vmem:[#allocation2 + $0x60] sm:$0xff] %v1903
    %2004 = vst [vmem:[#allocation2 + $0x68] sm:$0xff] %v1904
    %2005 = vst [vmem:[#allocation2 + $0x70] sm:$0xff] %v1905
    %2006 = vst [vmem:[#allocation2 + $0x78] sm:$0xff] %v1906
    %2007 = vst [vmem:[#allocation2 + $0x80] sm:$0xff] %v1907
    %2008 = vst [vmem:[#allocation2 + $0x88] sm:$0xff] %v1908
    %2009 = vst [vmem:[#allocation2 + $0x90] sm:$0xff] %v1909
    %2010 = vst [vmem:[#allocation2 + $0x98] sm:$0xff] %v1910
    %2011 = vst [vmem:[#allocation2 + $0xa0] sm:$0xff] %v1911
    %2012 = vst [vmem:[#allocation2 + $0xa8] sm:$0xff] %v1912
    %2013 = vst [vmem:[#allocation2 + $0xb0] sm:$0xff] %v1913
    %2014 = vst [vmem:[#allocation2 + $0xb8] sm:$0xff] %v1914
    %2015 = vst [vmem:[#allocation2 + $0xc0] sm:$0xff] %v1915
    %2016 = vst [vmem:[#allocation2 + $0xc8] sm:$0xff] %v1916
    %2017 = vst [vmem:[#allocation2 + $0xd0] sm:$0xff] %v1917
    %2018 = vst [vmem:[#allocation2 + $0xd8] sm:$0xff] %v1918
    %2019 = vst [vmem:[#allocation2 + $0xe0] sm:$0xff] %v1919
    %2020 = vst [vmem:[#allocation2 + $0xe8] sm:$0xff] %v1920
    %2021 = vst [vmem:[#allocation2 + $0xf0] sm:$0xff] %v1921
    %2022 = vst [vmem:[#allocation2 + $0xf8] sm:$0xff] %v1922
    %2023 = vst [vmem:[#allocation2 + $0x100] sm:$0xff] %v1923
    %2024 = vst [vmem:[#allocation2 + $0x108] sm:$0xff] %v1924
    %2025 = vst [vmem:[#allocation2 + $0x110] sm:$0xff] %v1925
    %2026 = vst [vmem:[#allocation2 + $0x118] sm:$0xff] %v1926
    %2027 = vst [vmem:[#allocation2 + $0x120] sm:$0xff] %v1927
    %2028 = vst [vmem:[#allocation2 + $0x128] sm:$0xff] %v1928
    %2029 = vst [vmem:[#allocation2 + $0x130] sm:$0xff] %v1929
    %2030 = vst [vmem:[#allocation2 + $0x138] sm:$0xff] %v1930
    %2031 = vst [vmem:[#allocation2 + $0x140] sm:$0xff] %v1931
    %2032 = vst [vmem:[#allocation2 + $0x148] sm:$0xff] %v1932
    %2033 = vst [vmem:[#allocation2 + $0x150] sm:$0xff] %v1933
    %2034 = vst [vmem:[#allocation2 + $0x158] sm:$0xff] %v1934
    %2035 = vst [vmem:[#allocation2 + $0x160] sm:$0xff] %v1935
    %2036 = vst [vmem:[#allocation2 + $0x168] sm:$0xff] %v1936
    %2037 = vst [vmem:[#allocation2 + $0x170] sm:$0xff] %v1937
    %2038 = vst [vmem:[#allocation2 + $0x178] sm:$0xff] %v1938
    %2039 = vst [vmem:[#allocation2 + $0x180] sm:$0xff] %v1939
    %2040 = vst [vmem:[#allocation2 + $0x188] sm:$0xff] %v1940
    %2041 = vst [vmem:[#allocation2 + $0x190] sm:$0xff] %v1941
    %2042 = vst [vmem:[#allocation2 + $0x198] sm:$0xff] %v1942
    %2043 = vst [vmem:[#allocation2 + $0x1a0] sm:$0xff] %v1943
    %2044 = vst [vmem:[#allocation2 + $0x1a8] sm:$0xff] %v1944
    %2045 = vst [vmem:[#allocation2 + $0x1b0] sm:$0xff] %v1945
    %2046 = vst [vmem:[#allocation2 + $0x1b8] sm:$0xff] %v1946
    %2047 = vst [vmem:[#allocation2 + $0x1c0] sm:$0xff] %v1947
    %2048 = vst [vmem:[#allocation2 + $0x1c8] sm:$0xff] %v1948
    %2049 = vst [vmem:[#allocation2 + $0x1d0] sm:$0xff] %v1949
    %2050 = vst [vmem:[#allocation2 + $0x1d8] sm:$0xff] %v1950
    %2051 = vst [vmem:[#allocation2 + $0x1e0] sm:$0xff] %v1951
    %2052 = vst [vmem:[#allocation2 + $0x1e8] sm:$0xff] %v1952
    %2053 = vst [vmem:[#allocation2 + $0x1f0] sm:$0xff] %v1953
    %2054 = vst [vmem:[#allocation2 + $0x1f8] sm:$0xff] %v1954
    %2055 = vst [vmem:[#allocation2 + $0x200] sm:$0xff] %v1955
    %2056 = vst [vmem:[#allocation2 + $0x208] sm:$0xff] %v1956
    %2057 = vst [vmem:[#allocation2 + $0x210] sm:$0xff] %v1957
    %2058 = vst [vmem:[#allocation2 + $0x218] sm:$0xff] %v1958
    %2059 = vst [vmem:[#allocation2 + $0x220] sm:$0xff] %v1959
    %2060 = vst [vmem:[#allocation2 + $0x228] sm:$0xff] %v1960
    %2061 = vst [vmem:[#allocation2 + $0x230] sm:$0xff] %v1961
    %2062 = vst [vmem:[#allocation2 + $0x238] sm:$0xff] %v1962
    %2063 = vst [vmem:[#allocation2 + $0x240] sm:$0xff] %v1963
    %2064 = vst [vmem:[#allocation2 + $0x248] sm:$0xff] %v1964
    %2065 = vst [vmem:[#allocation2 + $0x250] sm:$0xff] %v1965
    %2066 = vst [vmem:[#allocation2 + $0x258] sm:$0xff] %v1966
    %2067 = vst [vmem:[#allocation2 + $0x260] sm:$0xff] %v1967
    %2068 = vst [vmem:[#allocation2 + $0x268] sm:$0xff] %v1968
    %2069 = vst [vmem:[#allocation2 + $0x270] sm:$0xff] %v1969
    %2070 = vst [vmem:[#allocation2 + $0x278] sm:$0xff] %v1970
    %2071 = vst [vmem:[#allocation2 + $0x280] sm:$0xff] %v1971
    %2072 = vst [vmem:[#allocation2 + $0x288] sm:$0xff] %v1972
    %2073 = vst [vmem:[#allocation2 + $0x290] sm:$0xff] %v1973
    %2074 = vst [vmem:[#allocation2 + $0x298] sm:$0xff] %v1974
    %2075 = vst [vmem:[#allocation2 + $0x2a0] sm:$0xff] %v1975
    %2076 = vst [vmem:[#allocation2 + $0x2a8] sm:$0xff] %v1976
    %2077 = vst [vmem:[#allocation2 + $0x2b0] sm:$0xff] %v1977
    %2078 = vst [vmem:[#allocation2 + $0x2b8] sm:$0xff] %v1978
    %2079 = vst [vmem:[#allocation2 + $0x2c0] sm:$0xff] %v1979
    %2080 = vst [vmem:[#allocation2 + $0x2c8] sm:$0xff] %v1980
    %2081 = vst [vmem:[#allocation2 + $0x2d0] sm:$0xff] %v1981
    %2082 = vst [vmem:[#allocation2 + $0x2d8] sm:$0xff] %v1982
    %2083 = vst [vmem:[#allocation2 + $0x2e0] sm:$0xff] %v1983
    %2084 = vst [vmem:[#allocation2 + $0x2e8] sm:$0xff] %v1984
    %2085 = vst [vmem:[#allocation2 + $0x2f0] sm:$0xff] %v1985
    %2086 = vst [vmem:[#allocation2 + $0x2f8] sm:$0xff] %v1986
    %2087 = vst [vmem:[#allocation2 + $0x300] sm:$0xff] %v1987
    %2088 = vst [vmem:[#allocation2 + $0x308] sm:$0xff] %v1988
    %2089 = vst [vmem:[#allocation2 + $0x310] sm:$0xff] %v1989
    %2090 = vst [vmem:[#allocation2 + $0x318] sm:$0xff] %v1990
    // Predicated region
    $region26: #{tpu_custom_call.1} parent=1 // pred_check
      _
    $region27: #{tpu_custom_call.1} parent=1 // pred_check_branch
      %2092 = sbr.rel (0) target = $region29
    $region28: #{tpu_custom_call.1} parent=1 // pred_region
      %2094 = vsyncadd [#allocation3], 0
      %s2095 = sshll.u32 [#allocation2], 4
      %s2096 = int_to_ptr.vmem [resolvable:$true] %s2095
      %s2097 = sshll.u32 %s6, 4
      %s2098 = int_to_ptr.hbm [resolvable:$true] %s2097
      %2103 = dma.vmem_to_hbm [thread:$0]  %s2096, 12800, %s2098, [#allocation3], 128, 128, 8
    $region29: #{tpu_custom_call.1} parent=1 // pred_fallthru
      _
    // Predicated region
    $region30: #{tpu_custom_call.1} parent=1 // pred_check
      _
    $region31: #{tpu_custom_call.1} parent=1 // pred_check_branch
      %2105 = sbr.rel (0) target = $region33
    $region32: #{tpu_custom_call.1} parent=1 // pred_region
      %2107 = dma.done [#allocation3], 12800
    $region33: #{tpu_custom_call.1} parent=1 // pred_fallthru
      _
    %2108 = vsyncpa [#allocation3], 1

</llo_original>
